<compile_context>
chip_gen: v6e
topology: v6e:2x2x1
jax: 0.10.0
libtpu: 0.0.40
codegen_flags: <defaults>
</compile_context>

<pallas_src>
import functools

import jax
import jax.numpy as jnp
from jax.experimental import pallas as pl
from jax.experimental.pallas import tpu as pltpu


def _upsample_kernel(x_ref, o_ref, *, k, g, w):
    # x_ref: (TM, k*w)       -- k folded input image rows per super-row.
    # o_ref: (TM, k*g*g*w)   -- contiguous replicated payload of those k rows.
    x = x_ref[...]
    # Width (dj) replication: lane interleave.
    #   rep[:, (r*w + j)*g + dj] = x[:, r*w + j]
    rep = jnp.repeat(x, g, axis=1)                       # (TM, k*g*w)
    gw = g * w
    # Height (di) replication: each sub-row's g*w-wide replicated row appears g
    # consecutive times in the output payload.  Build the whole lane-dense tile and
    # store it once (single unmasked full-block store).
    parts = []
    for r in range(k):
        piece = rep[:, r * gw:(r + 1) * gw]              # (TM, g*w)
        parts.extend([piece] * g)
    out = parts[0] if len(parts) == 1 else jnp.concatenate(parts, axis=1)
    o_ref[...] = out.astype(o_ref.dtype)


def _fold_factor(m, w, max_k=16):
    """How many input rows to fold into one lane-dense super-row (must divide m)."""
    if w >= 128:
        return 1
    k = min(max_k, max(1, 128 // w))
    while k > 1 and m % k != 0:
        k -= 1
    return k


def _choose_tm(m_rows, in_cols, out_cols, itemsize, *, min_steps=8,
               vmem_budget_bytes=8 * 1024 * 1024):
    """Row-tile size: as large as the VMEM budget allows, dtype-sublane aligned."""
    # Sublane multiple per dtype width: f32 -> 8, bf16 -> 16, int8/fp8 -> 32.
    sub = {4: 8, 2: 16, 1: 32}.get(itemsize, 8)
    # Per-row VMEM bytes: double-buffered input + output blocks, plus one
    # output-sized intermediate built by the in-kernel concatenate.
    bytes_per_row = itemsize * (2 * (in_cols + out_cols) + out_cols)
    tm = max(1, vmem_budget_bytes // bytes_per_row)
    # Keep enough grid steps that input DMA / compute / output DMA overlap.
    tm = min(tm, max(sub, pl.cdiv(m_rows, min_steps)))
    if tm >= m_rows:
        return m_rows
    # Align down to the sublane multiple; never fall back to the full M (that could
    # silently blow the VMEM budget for very wide rows) -- clamp to one group.
    tm = max(sub, (tm // sub) * sub)
    return min(tm, m_rows)


def upsample_nearest(x, g):
    """Pallas equivalent of UpsampleLayer(g).forward(x) for NCHW input."""
    g = int(g)
    assert g >= 1, "only integer scale factors >= 1 are supported (matches module use)"
    B, C, H, W = x.shape
    if g == 1:
        return x

    M = B * C * H
    GGW = g * g * W                       # contiguous payload of one input row
    k = _fold_factor(M, W)                # rows folded per super-row (k | M)
    m_rows = M // k
    in_cols = k * W
    out_cols = k * GGW

    xf = x.reshape(m_rows, in_cols)       # free: groups k consecutive rows

    TM = _choose_tm(m_rows, in_cols, out_cols, x.dtype.itemsize)
    grid = (pl.cdiv(m_rows, TM),)

    kernel = functools.partial(_upsample_kernel, k=k, g=g, w=W)
    in_bytes = M * W * x.dtype.itemsize
    cost = pl.CostEstimate(flops=0, transcendentals=0,
                           bytes_accessed=in_bytes * (1 + g * g))

    yf = pl.pallas_call(
        kernel,
        out_shape=jax.ShapeDtypeStruct((m_rows, out_cols), x.dtype),
        grid=grid,
        in_specs=[pl.BlockSpec((TM, in_cols), lambda i: (i, 0))],
        out_specs=pl.BlockSpec((TM, out_cols), lambda i: (i, 0)),
        compiler_params=pltpu.CompilerParams(
            dimension_semantics=("parallel",),
            vmem_limit_bytes=32 * 1024 * 1024,
        ),
        cost_estimate=cost,
    )(xf)

    # Free reshape: (m_rows, k*g*g*W) row-major == (B, C, H*g, W*g) row-major.
    return yf.reshape(B, C, H * g, W * g)


if __name__ == "__main__":
    key = jax.random.PRNGKey(0)
    B, C, H, W = 2, 4, 16, 16
    g = 2

    x = jax.random.normal(key, (B, C, H, W), dtype=jnp.float32)

    y = jax.block_until_ready(upsample_nearest(x, g))

    # Pure-JAX reference: nearest upsample == repeat along H and W.
    y_ref = jnp.repeat(jnp.repeat(x, g, axis=2), g, axis=3)

    assert y.shape == (B, C, H * g, W * g), y.shape
    assert y.dtype == x.dtype, y.dtype
    assert jnp.allclose(y, y_ref, rtol=0.0, atol=0.0), float(
        jnp.max(jnp.abs(y - y_ref))
    )

    print("KERNEL_OK")
</pallas_src>

<mosaic_0001>
module attributes {stable_mosaic.version = 11 : i64} {
  func.func @_upsample_kernel(%arg0: i32, %arg1: memref<8x128xf32, #tpu.memory_space<vmem>>, %arg2: memref<8x512xf32, #tpu.memory_space<vmem>>) attributes {dimension_semantics = [#tpu.dimension_semantics<parallel>], iteration_bounds = array<i64: 2>, scalar_prefetch = 0 : i64, scratch_operands = 0 : i64, tpu.core_type = #tpu.core_type<tc>, window_params = [{transform_indices = @transform_0, window_bounds = array<i64: 8, 128>}, {transform_indices = @transform_1, window_bounds = array<i64: 8, 512>}]} {
    %c0 = arith.constant 0 : index
    %c0_0 = arith.constant 0 : index
    %0 = vector.load %arg1[%c0, %c0_0] : memref<8x128xf32, #tpu.memory_space<vmem>>, vector<8x128xf32>
    %1 = vector.shape_cast %0 : vector<8x128xf32> to vector<8x128x1xf32>
    %2 = vector.broadcast %1 : vector<8x128x1xf32> to vector<8x128x2xf32>
    %3 = vector.shape_cast %2 : vector<8x128x2xf32> to vector<8x256xf32>
    %4 = vector.extract_strided_slice %3 {offsets = [0, 0], sizes = [8, 32], strides = [1, 1]} : vector<8x256xf32> to vector<8x32xf32>
    %5 = vector.extract_strided_slice %3 {offsets = [0, 32], sizes = [8, 32], strides = [1, 1]} : vector<8x256xf32> to vector<8x32xf32>
    %6 = vector.extract_strided_slice %3 {offsets = [0, 64], sizes = [8, 32], strides = [1, 1]} : vector<8x256xf32> to vector<8x32xf32>
    %7 = vector.extract_strided_slice %3 {offsets = [0, 96], sizes = [8, 32], strides = [1, 1]} : vector<8x256xf32> to vector<8x32xf32>
    %8 = vector.extract_strided_slice %3 {offsets = [0, 128], sizes = [8, 32], strides = [1, 1]} : vector<8x256xf32> to vector<8x32xf32>
    %9 = vector.extract_strided_slice %3 {offsets = [0, 160], sizes = [8, 32], strides = [1, 1]} : vector<8x256xf32> to vector<8x32xf32>
    %10 = vector.extract_strided_slice %3 {offsets = [0, 192], sizes = [8, 32], strides = [1, 1]} : vector<8x256xf32> to vector<8x32xf32>
    %11 = vector.extract_strided_slice %3 {offsets = [0, 224], sizes = [8, 32], strides = [1, 1]} : vector<8x256xf32> to vector<8x32xf32>
    %12 = tpu.concatenate %4, %4, %5, %5, %6, %6, %7, %7, %8, %8, %9, %9, %10, %10, %11, %11 in 1 : vector<8x32xf32>, vector<8x32xf32>, vector<8x32xf32>, vector<8x32xf32>, vector<8x32xf32>, vector<8x32xf32>, vector<8x32xf32>, vector<8x32xf32>, vector<8x32xf32>, vector<8x32xf32>, vector<8x32xf32>, vector<8x32xf32>, vector<8x32xf32>, vector<8x32xf32>, vector<8x32xf32>, vector<8x32xf32> -> vector<8x512xf32>
    %c0_1 = arith.constant 0 : index
    %c0_2 = arith.constant 0 : index
    %13 = vector.load %arg2[%c0_1, %c0_2] : memref<8x512xf32, #tpu.memory_space<vmem>>, vector<8x512xf32>
    tpu.vector_store %arg2[%c0_1, %c0_2], %12 {strides = array<i32>} : memref<8x512xf32, #tpu.memory_space<vmem>>, vector<8x512xf32>,
    return
  }
  func.func @transform_0(%arg0: i32) -> (i32, i32) {
    %c0_i32 = arith.constant 0 : i32
    %c0_i32_0 = arith.constant 0 : i32
    return %arg0, %c0_i32 : i32, i32
  }
  func.func @transform_1(%arg0: i32) -> (i32, i32) {
    %c0_i32 = arith.constant 0 : i32
    %c0_i32_0 = arith.constant 0 : i32
    return %arg0, %c0_i32 : i32, i32
  }
}

</mosaic_0001>

<llo_original>
// kernel: tpu_custom_call.1
$region0: #{tpu_custom_call.1}
  #allocation0 [shape = 'u32[]', space=smem, size = 0x4, offset = 0x4, fixed_abs, tag = 'smem constant byte address 0x4 - core index']
  #allocation1 [shape = 'u32[144,128]{1,0:T(1,128)}', space=vmem, size = 0x12000, scoped, tag = 'internal scratch']
  %s0 = inlined_call_operand.hbm [shape: f32[16,128], index: 0, kind: input, shape index: {}]
  %s1 = inlined_call_operand.hbm [shape: f32[16,512], index: 1, kind: output, shape index: {}]
  %s2 = sld [smem:[#allocation0]]
  $region41: #{tpu_custom_call.1} parent=0
    _
  %s4 = ssub.s32 1, %s2
  %s5 = scalar_select 0, %s4, %s2
  $region1: #{tpu_custom_call.1} parent=0
    #allocation2 [shape = 'u8[8192]{0}', space=vmem, size = 0x2000, scoped, tag = 'input window, operand 0']
    #allocation3 [shape = 's32[2]{0}', space=sflag, size = 0x8, scoped, tag = 'scoped memory for tpu_custom_call.1']
    #allocation4 [shape = 's32[2]{0}', space=sflag, size = 0x8, scoped, tag = 'scoped memory for tpu_custom_call.1']
    #allocation5 [shape = 'u8[32768]{0}', space=vmem, size = 0x8000, scoped, tag = 'output window, operand 0']
    %6 = vsyncpa [#allocation3], 0
    %s7 = scalar_lea.sflag [#allocation3], 1
    %8 = vsyncpa %s7, 0
    %9 = vsyncpa [#allocation4], 0
    %s10 = scalar_lea.sflag [#allocation4], 1
    %11 = vsyncpa %s10, 0
    loop: start=0, step=1, limit=4
    $region2: #{tpu_custom_call.1} parent=1 // loop_pre_header
      _
    $region3: #{tpu_custom_call.1} parent=1 // loop_header
      %s13 = sphi 0, %s17
      %p14 = scmp.ge.s32.totalorder %s13, 4
      %s23 = sphi 0, %s25
      %s26 = sphi 0, %s23
      %s27 = sphi 0, %s26
      %s43 = sphi 0, %s27
      %s49 = sphi 0, %s51
      %s52 = sphi 0, %s49
      %s53 = sphi 0, %s52
      %s69 = sphi 0, %s53
    $region4: #{tpu_custom_call.1} parent=1 // loop_header_branch
      %16 = sbr.rel (%p14) target = $region8
    $region5: #{tpu_custom_call.1} parent=1 // loop_body
      %s18 = ssub.s32 %s13, 1
      %s19 = ssub.s32 %s13, 2
      %s20 = sadd.s32 %s13, 1
      %s21 = ssub.s32 %s13, %s20
      %p22 = scmp.eq.s32.totalorder %s21, 0
      %s24 = sadd.s32 %s23, 1
      %s25 = scalar_select %p22, %s23, %s24
      %p28 = pneg %p22
      %p29 = scmp.eq.s32.totalorder %s13, 1
      %p30 = por %p28, %p29
      %p31 = scmp.ne.s32.totalorder %s23, %s26
      %p32 = scmp.eq.s32.totalorder %s13, 0
      %p33 = por %p31, %p32
      %p34 = scmp.ne.s32.totalorder %s23, %s26
      %p35 = scmp.eq.s32.totalorder %s18, 1
      %p36 = por %p34, %p35
      %p37 = scmp.ne.s32.totalorder %s26, %s27
      %p38 = scmp.eq.s32.totalorder %s18, 0
      %p39 = por %p37, %p38
      %p40 = scmp.ne.s32.totalorder %s26, %s27
      %p41 = scmp.eq.s32.totalorder %s19, 1
      %p42 = por %p40, %p41
      %p44 = scmp.ne.s32.totalorder %s27, %s43
      %p45 = scmp.eq.s32.totalorder %s19, 0
      %p46 = por %p44, %p45
      %s47 = ssub.s32 %s13, %s20
      %p48 = scmp.eq.s32.totalorder %s47, 0
      %s50 = sadd.s32 %s49, 1
      %s51 = scalar_select %p48, %s49, %s50
      %p54 = pneg %p48
      %p55 = scmp.eq.s32.totalorder %s13, 1
      %p56 = por %p54, %p55
      %p57 = scmp.ne.s32.totalorder %s49, %s52
      %p58 = scmp.eq.s32.totalorder %s13, 0
      %p59 = por %p57, %p58
      %p60 = scmp.ne.s32.totalorder %s49, %s52
      %p61 = scmp.eq.s32.totalorder %s18, 1
      %p62 = por %p60, %p61
      %p63 = scmp.ne.s32.totalorder %s52, %s53
      %p64 = scmp.eq.s32.totalorder %s18, 0
      %p65 = por %p63, %p64
      %p66 = scmp.ne.s32.totalorder %s52, %s53
      %p67 = scmp.eq.s32.totalorder %s19, 1
      %p68 = por %p66, %p67
      %p70 = scmp.ne.s32.totalorder %s53, %s69
      %p71 = scmp.eq.s32.totalorder %s19, 0
      %p72 = por %p70, %p71
      %p73 = scmp.le.s32.totalorder 1, %s13
      %p74 = scmp.lt.s32.totalorder %s13, 3
      %p75 = pnand %p73, %p74
      %p76 = pneg %p75
      // Predicated region
      $region9: #{tpu_custom_call.1} parent=5 // pred_check
        _
      $region10: #{tpu_custom_call.1} parent=5 // pred_check_branch
        %78 = sbr.rel (%p75) target = $region12
      $region11: #{tpu_custom_call.1} parent=5 // pred_region
        %s79 = ssub.s32 %s13, 1
      $region12: #{tpu_custom_call.1} parent=5 // pred_fallthru
        _
      %p80 = scmp.lt.s32.totalorder %s13, 2
      // Predicated region
      $region13: #{tpu_custom_call.1} parent=5 // pred_check
        %p81 = pneg %p80
      $region14: #{tpu_custom_call.1} parent=5 // pred_check_branch
        %83 = sbr.rel (%p81) target = $region16
      $region15: #{tpu_custom_call.1} parent=5 // pred_region
        // Predicated region
        $region17: #{tpu_custom_call.1} parent=15 // pred_check
          %p84 = pneg %p33
        $region18: #{tpu_custom_call.1} parent=15 // pred_check_branch
          %86 = sbr.rel (%p84) target = $region20
        $region19: #{tpu_custom_call.1} parent=15 // pred_region
          %s87 = sand.u32 %s23, 1
          %s88 = scalar_lea.sflag [#allocation3], %s87
          %s89 = sand.u32 %s23, 1
          %s90 = smul.addr %s89, 8
          %s91 = scalar_lea.vmem [#allocation2], %s90
          %s93 = ssub.s32 128, 128
          %94 = vsyncadd %s88, %s93
          %s95 = smul.addr %s13, 128
          %s96 = scalar_lea.hbm %s0, %s95
          %s98 = sshll.u32 %s91, 4
          %s99 = int_to_ptr.vmem [resolvable:$true] %s98
          %101 = dma.hbm_to_vmem [thread:$0]  %s96, 128, %s99, %s88
        $region20: #{tpu_custom_call.1} parent=15 // pred_fallthru
          _
      $region16: #{tpu_custom_call.1} parent=5 // pred_fallthru
        _
      %p102 = scmp.le.s32.totalorder 1, %s13
      %p103 = scmp.lt.s32.totalorder %s13, 3
      %p104 = pnand %p102, %p103
      %p105 = pneg %p104
      // Predicated region
      $region21: #{tpu_custom_call.1} parent=5 // pred_check
        _
      $region22: #{tpu_custom_call.1} parent=5 // pred_check_branch
        %107 = sbr.rel (%p104) target = $region24
      $region23: #{tpu_custom_call.1} parent=5 // pred_region
        %s108 = ssub.s32 %s13, 1
        %s109 = sand.u32 %s26, 1
        %s110 = scalar_lea.sflag [#allocation3], %s109
        %s111 = sand.u32 %s26, 1
        %s112 = smul.addr %s111, 8
        %s113 = scalar_lea.vmem [#allocation2], %s112
        // Predicated region
        $region25: #{tpu_custom_call.1} parent=23 // pred_check
          %p114 = pneg %p39
        $region26: #{tpu_custom_call.1} parent=23 // pred_check_branch
          %116 = sbr.rel (%p114) target = $region28
        $region27: #{tpu_custom_call.1} parent=23 // pred_region
          %117 = dma.done %s110, 128
        $region28: #{tpu_custom_call.1} parent=23 // pred_fallthru
          _
        %s118 = sand.u32 %s26, 1
        %s119 = scalar_lea.sflag [#allocation3], %s118
        %s120 = sand.u32 %s26, 1
        %s121 = smul.addr %s120, 8
        %s122 = scalar_lea.vmem [#allocation2], %s121
        %p123 = pneg %p39
        %p124 = pneg %p36
        %p125 = pneg %p65
        %p126 = pneg %p62
        %s127 = sand.u32 %s52, 1
        %s128 = scalar_lea.sflag [#allocation4], %s127
        %s129 = sand.u32 %s52, 1
        %s130 = smul.addr %s129, 32
        %s131 = scalar_lea.vmem [#allocation5], %s130
        %v132 = vld [vmem:[%s113] sm:$0xff]
        %v133 = vlaneseq
        %v134 = vshrl.u32 %v133, 7
        %v135 = vsub.s32 0, %v134
        %v136 = vrot.slane %v132, %v135
        %138 = vbcast.lane.b32.xlu0 %v136, 256
        %v139 = vpop.permute.xlu0 %138
        %s141 = sor.u32 256, 8
        %142 = vbcast.lane.b32.xlu0 %v136, %s141
        %v143 = vpop.permute.xlu0 %142
        %s145 = sor.u32 256, 16
        %146 = vbcast.lane.b32.xlu0 %v136, %s145
        %v147 = vpop.permute.xlu0 %146
        %s149 = sor.u32 256, 24
        %150 = vbcast.lane.b32.xlu0 %v136, %s149
        %v151 = vpop.permute.xlu0 %150
        %s153 = sor.u32 256, 32
        %154 = vbcast.lane.b32.xlu0 %v136, %s153
        %v155 = vpop.permute.xlu0 %154
        %s157 = sor.u32 256, 40
        %158 = vbcast.lane.b32.xlu0 %v136, %s157
        %v159 = vpop.permute.xlu0 %158
        %s161 = sor.u32 256, 48
        %162 = vbcast.lane.b32.xlu0 %v136, %s161
        %v163 = vpop.permute.xlu0 %162
        %s165 = sor.u32 256, 56
        %166 = vbcast.lane.b32.xlu0 %v136, %s165
        %v167 = vpop.permute.xlu0 %166
        %s169 = sor.u32 256, 64
        %170 = vbcast.lane.b32.xlu0 %v136, %s169
        %v171 = vpop.permute.xlu0 %170
        %s173 = sor.u32 256, 72
        %174 = vbcast.lane.b32.xlu0 %v136, %s173
        %v175 = vpop.permute.xlu0 %174
        %s177 = sor.u32 256, 80
        %178 = vbcast.lane.b32.xlu0 %v136, %s177
        %v179 = vpop.permute.xlu0 %178
        %s181 = sor.u32 256, 88
        %182 = vbcast.lane.b32.xlu0 %v136, %s181
        %v183 = vpop.permute.xlu0 %182
        %s185 = sor.u32 256, 96
        %186 = vbcast.lane.b32.xlu0 %v136, %s185
        %v187 = vpop.permute.xlu0 %186
        %s189 = sor.u32 256, 104
        %190 = vbcast.lane.b32.xlu0 %v136, %s189
        %v191 = vpop.permute.xlu0 %190
        %s193 = sor.u32 256, 112
        %194 = vbcast.lane.b32.xlu0 %v136, %s193
        %v195 = vpop.permute.xlu0 %194
        %s197 = sor.u32 256, 120
        %198 = vbcast.lane.b32.xlu0 %v136, %s197
        %v199 = vpop.permute.xlu0 %198
        %v200 = vlaneseq
        %v201 = vshrl.u32 %v200, 7
        %v202 = vsub.s32 1, %v201
        %v203 = vrot.slane %v132, %v202
        %205 = vbcast.lane.b32.xlu0 %v203, 256
        %v206 = vpop.permute.xlu0 %205
        %s208 = sor.u32 256, 8
        %209 = vbcast.lane.b32.xlu0 %v203, %s208
        %v210 = vpop.permute.xlu0 %209
        %s212 = sor.u32 256, 16
        %213 = vbcast.lane.b32.xlu0 %v203, %s212
        %v214 = vpop.permute.xlu0 %213
        %s216 = sor.u32 256, 24
        %217 = vbcast.lane.b32.xlu0 %v203, %s216
        %v218 = vpop.permute.xlu0 %217
        %s220 = sor.u32 256, 32
        %221 = vbcast.lane.b32.xlu0 %v203, %s220
        %v222 = vpop.permute.xlu0 %221
        %s224 = sor.u32 256, 40
        %225 = vbcast.lane.b32.xlu0 %v203, %s224
        %v226 = vpop.permute.xlu0 %225
        %s228 = sor.u32 256, 48
        %229 = vbcast.lane.b32.xlu0 %v203, %s228
        %v230 = vpop.permute.xlu0 %229
        %s232 = sor.u32 256, 56
        %233 = vbcast.lane.b32.xlu0 %v203, %s232
        %v234 = vpop.permute.xlu0 %233
        %s236 = sor.u32 256, 64
        %237 = vbcast.lane.b32.xlu0 %v203, %s236
        %v238 = vpop.permute.xlu0 %237
        %s240 = sor.u32 256, 72
        %241 = vbcast.lane.b32.xlu0 %v203, %s240
        %v242 = vpop.permute.xlu0 %241
        %s244 = sor.u32 256, 80
        %245 = vbcast.lane.b32.xlu0 %v203, %s244
        %v246 = vpop.permute.xlu0 %245
        %s248 = sor.u32 256, 88
        %249 = vbcast.lane.b32.xlu0 %v203, %s248
        %v250 = vpop.permute.xlu0 %249
        %s252 = sor.u32 256, 96
        %253 = vbcast.lane.b32.xlu0 %v203, %s252
        %v254 = vpop.permute.xlu0 %253
        %s256 = sor.u32 256, 104
        %257 = vbcast.lane.b32.xlu0 %v203, %s256
        %v258 = vpop.permute.xlu0 %257
        %s260 = sor.u32 256, 112
        %261 = vbcast.lane.b32.xlu0 %v203, %s260
        %v262 = vpop.permute.xlu0 %261
        %s264 = sor.u32 256, 120
        %265 = vbcast.lane.b32.xlu0 %v203, %s264
        %v266 = vpop.permute.xlu0 %265
        %v267 = vlaneseq
        %v268 = vshrl.u32 %v267, 7
        %v269 = vsub.s32 2, %v268
        %v270 = vrot.slane %v132, %v269
        %272 = vbcast.lane.b32.xlu0 %v270, 256
        %v273 = vpop.permute.xlu0 %272
        %s275 = sor.u32 256, 8
        %276 = vbcast.lane.b32.xlu0 %v270, %s275
        %v277 = vpop.permute.xlu0 %276
        %s279 = sor.u32 256, 16
        %280 = vbcast.lane.b32.xlu0 %v270, %s279
        %v281 = vpop.permute.xlu0 %280
        %s283 = sor.u32 256, 24
        %284 = vbcast.lane.b32.xlu0 %v270, %s283
        %v285 = vpop.permute.xlu0 %284
        %s287 = sor.u32 256, 32
        %288 = vbcast.lane.b32.xlu0 %v270, %s287
        %v289 = vpop.permute.xlu0 %288
        %s291 = sor.u32 256, 40
        %292 = vbcast.lane.b32.xlu0 %v270, %s291
        %v293 = vpop.permute.xlu0 %292
        %s295 = sor.u32 256, 48
        %296 = vbcast.lane.b32.xlu0 %v270, %s295
        %v297 = vpop.permute.xlu0 %296
        %s299 = sor.u32 256, 56
        %300 = vbcast.lane.b32.xlu0 %v270, %s299
        %v301 = vpop.permute.xlu0 %300
        %s303 = sor.u32 256, 64
        %304 = vbcast.lane.b32.xlu0 %v270, %s303
        %v305 = vpop.permute.xlu0 %304
        %s307 = sor.u32 256, 72
        %308 = vbcast.lane.b32.xlu0 %v270, %s307
        %v309 = vpop.permute.xlu0 %308
        %s311 = sor.u32 256, 80
        %312 = vbcast.lane.b32.xlu0 %v270, %s311
        %v313 = vpop.permute.xlu0 %312
        %s315 = sor.u32 256, 88
        %316 = vbcast.lane.b32.xlu0 %v270, %s315
        %v317 = vpop.permute.xlu0 %316
        %s319 = sor.u32 256, 96
        %320 = vbcast.lane.b32.xlu0 %v270, %s319
        %v321 = vpop.permute.xlu0 %320
        %s323 = sor.u32 256, 104
        %324 = vbcast.lane.b32.xlu0 %v270, %s323
        %v325 = vpop.permute.xlu0 %324
        %s327 = sor.u32 256, 112
        %328 = vbcast.lane.b32.xlu0 %v270, %s327
        %v329 = vpop.permute.xlu0 %328
        %s331 = sor.u32 256, 120
        %332 = vbcast.lane.b32.xlu0 %v270, %s331
        %v333 = vpop.permute.xlu0 %332
        %v334 = vlaneseq
        %v335 = vshrl.u32 %v334, 7
        %v336 = vsub.s32 3, %v335
        %v337 = vrot.slane %v132, %v336
        %339 = vbcast.lane.b32.xlu0 %v337, 256
        %v340 = vpop.permute.xlu0 %339
        %s342 = sor.u32 256, 8
        %343 = vbcast.lane.b32.xlu0 %v337, %s342
        %v344 = vpop.permute.xlu0 %343
        %s346 = sor.u32 256, 16
        %347 = vbcast.lane.b32.xlu0 %v337, %s346
        %v348 = vpop.permute.xlu0 %347
        %s350 = sor.u32 256, 24
        %351 = vbcast.lane.b32.xlu0 %v337, %s350
        %v352 = vpop.permute.xlu0 %351
        %s354 = sor.u32 256, 32
        %355 = vbcast.lane.b32.xlu0 %v337, %s354
        %v356 = vpop.permute.xlu0 %355
        %s358 = sor.u32 256, 40
        %359 = vbcast.lane.b32.xlu0 %v337, %s358
        %v360 = vpop.permute.xlu0 %359
        %s362 = sor.u32 256, 48
        %363 = vbcast.lane.b32.xlu0 %v337, %s362
        %v364 = vpop.permute.xlu0 %363
        %s366 = sor.u32 256, 56
        %367 = vbcast.lane.b32.xlu0 %v337, %s366
        %v368 = vpop.permute.xlu0 %367
        %s370 = sor.u32 256, 64
        %371 = vbcast.lane.b32.xlu0 %v337, %s370
        %v372 = vpop.permute.xlu0 %371
        %s374 = sor.u32 256, 72
        %375 = vbcast.lane.b32.xlu0 %v337, %s374
        %v376 = vpop.permute.xlu0 %375
        %s378 = sor.u32 256, 80
        %379 = vbcast.lane.b32.xlu0 %v337, %s378
        %v380 = vpop.permute.xlu0 %379
        %s382 = sor.u32 256, 88
        %383 = vbcast.lane.b32.xlu0 %v337, %s382
        %v384 = vpop.permute.xlu0 %383
        %s386 = sor.u32 256, 96
        %387 = vbcast.lane.b32.xlu0 %v337, %s386
        %v388 = vpop.permute.xlu0 %387
        %s390 = sor.u32 256, 104
        %391 = vbcast.lane.b32.xlu0 %v337, %s390
        %v392 = vpop.permute.xlu0 %391
        %s394 = sor.u32 256, 112
        %395 = vbcast.lane.b32.xlu0 %v337, %s394
        %v396 = vpop.permute.xlu0 %395
        %s398 = sor.u32 256, 120
        %399 = vbcast.lane.b32.xlu0 %v337, %s398
        %v400 = vpop.permute.xlu0 %399
        %v401 = vlaneseq
        %v402 = vshrl.u32 %v401, 7
        %v403 = vsub.s32 4, %v402
        %v404 = vrot.slane %v132, %v403
        %406 = vbcast.lane.b32.xlu0 %v404, 256
        %v407 = vpop.permute.xlu0 %406
        %s409 = sor.u32 256, 8
        %410 = vbcast.lane.b32.xlu0 %v404, %s409
        %v411 = vpop.permute.xlu0 %410
        %s413 = sor.u32 256, 16
        %414 = vbcast.lane.b32.xlu0 %v404, %s413
        %v415 = vpop.permute.xlu0 %414
        %s417 = sor.u32 256, 24
        %418 = vbcast.lane.b32.xlu0 %v404, %s417
        %v419 = vpop.permute.xlu0 %418
        %s421 = sor.u32 256, 32
        %422 = vbcast.lane.b32.xlu0 %v404, %s421
        %v423 = vpop.permute.xlu0 %422
        %s425 = sor.u32 256, 40
        %426 = vbcast.lane.b32.xlu0 %v404, %s425
        %v427 = vpop.permute.xlu0 %426
        %s429 = sor.u32 256, 48
        %430 = vbcast.lane.b32.xlu0 %v404, %s429
        %v431 = vpop.permute.xlu0 %430
        %s433 = sor.u32 256, 56
        %434 = vbcast.lane.b32.xlu0 %v404, %s433
        %v435 = vpop.permute.xlu0 %434
        %s437 = sor.u32 256, 64
        %438 = vbcast.lane.b32.xlu0 %v404, %s437
        %v439 = vpop.permute.xlu0 %438
        %s441 = sor.u32 256, 72
        %442 = vbcast.lane.b32.xlu0 %v404, %s441
        %v443 = vpop.permute.xlu0 %442
        %s445 = sor.u32 256, 80
        %446 = vbcast.lane.b32.xlu0 %v404, %s445
        %v447 = vpop.permute.xlu0 %446
        %s449 = sor.u32 256, 88
        %450 = vbcast.lane.b32.xlu0 %v404, %s449
        %v451 = vpop.permute.xlu0 %450
        %s453 = sor.u32 256, 96
        %454 = vbcast.lane.b32.xlu0 %v404, %s453
        %v455 = vpop.permute.xlu0 %454
        %s457 = sor.u32 256, 104
        %458 = vbcast.lane.b32.xlu0 %v404, %s457
        %v459 = vpop.permute.xlu0 %458
        %s461 = sor.u32 256, 112
        %462 = vbcast.lane.b32.xlu0 %v404, %s461
        %v463 = vpop.permute.xlu0 %462
        %s465 = sor.u32 256, 120
        %466 = vbcast.lane.b32.xlu0 %v404, %s465
        %v467 = vpop.permute.xlu0 %466
        %v468 = vlaneseq
        %v469 = vshrl.u32 %v468, 7
        %v470 = vsub.s32 5, %v469
        %v471 = vrot.slane %v132, %v470
        %473 = vbcast.lane.b32.xlu0 %v471, 256
        %v474 = vpop.permute.xlu0 %473
        %s476 = sor.u32 256, 8
        %477 = vbcast.lane.b32.xlu0 %v471, %s476
        %v478 = vpop.permute.xlu0 %477
        %s480 = sor.u32 256, 16
        %481 = vbcast.lane.b32.xlu0 %v471, %s480
        %v482 = vpop.permute.xlu0 %481
        %s484 = sor.u32 256, 24
        %485 = vbcast.lane.b32.xlu0 %v471, %s484
        %v486 = vpop.permute.xlu0 %485
        %s488 = sor.u32 256, 32
        %489 = vbcast.lane.b32.xlu0 %v471, %s488
        %v490 = vpop.permute.xlu0 %489
        %s492 = sor.u32 256, 40
        %493 = vbcast.lane.b32.xlu0 %v471, %s492
        %v494 = vpop.permute.xlu0 %493
        %s496 = sor.u32 256, 48
        %497 = vbcast.lane.b32.xlu0 %v471, %s496
        %v498 = vpop.permute.xlu0 %497
        %s500 = sor.u32 256, 56
        %501 = vbcast.lane.b32.xlu0 %v471, %s500
        %v502 = vpop.permute.xlu0 %501
        %s504 = sor.u32 256, 64
        %505 = vbcast.lane.b32.xlu0 %v471, %s504
        %v506 = vpop.permute.xlu0 %505
        %s508 = sor.u32 256, 72
        %509 = vbcast.lane.b32.xlu0 %v471, %s508
        %v510 = vpop.permute.xlu0 %509
        %s512 = sor.u32 256, 80
        %513 = vbcast.lane.b32.xlu0 %v471, %s512
        %v514 = vpop.permute.xlu0 %513
        %s516 = sor.u32 256, 88
        %517 = vbcast.lane.b32.xlu0 %v471, %s516
        %v518 = vpop.permute.xlu0 %517
        %s520 = sor.u32 256, 96
        %521 = vbcast.lane.b32.xlu0 %v471, %s520
        %v522 = vpop.permute.xlu0 %521
        %s524 = sor.u32 256, 104
        %525 = vbcast.lane.b32.xlu0 %v471, %s524
        %v526 = vpop.permute.xlu0 %525
        %s528 = sor.u32 256, 112
        %529 = vbcast.lane.b32.xlu0 %v471, %s528
        %v530 = vpop.permute.xlu0 %529
        %s532 = sor.u32 256, 120
        %533 = vbcast.lane.b32.xlu0 %v471, %s532
        %v534 = vpop.permute.xlu0 %533
        %v535 = vlaneseq
        %v536 = vshrl.u32 %v535, 7
        %v537 = vsub.s32 6, %v536
        %v538 = vrot.slane %v132, %v537
        %540 = vbcast.lane.b32.xlu0 %v538, 256
        %v541 = vpop.permute.xlu0 %540
        %s543 = sor.u32 256, 8
        %544 = vbcast.lane.b32.xlu0 %v538, %s543
        %v545 = vpop.permute.xlu0 %544
        %s547 = sor.u32 256, 16
        %548 = vbcast.lane.b32.xlu0 %v538, %s547
        %v549 = vpop.permute.xlu0 %548
        %s551 = sor.u32 256, 24
        %552 = vbcast.lane.b32.xlu0 %v538, %s551
        %v553 = vpop.permute.xlu0 %552
        %s555 = sor.u32 256, 32
        %556 = vbcast.lane.b32.xlu0 %v538, %s555
        %v557 = vpop.permute.xlu0 %556
        %s559 = sor.u32 256, 40
        %560 = vbcast.lane.b32.xlu0 %v538, %s559
        %v561 = vpop.permute.xlu0 %560
        %s563 = sor.u32 256, 48
        %564 = vbcast.lane.b32.xlu0 %v538, %s563
        %v565 = vpop.permute.xlu0 %564
        %s567 = sor.u32 256, 56
        %568 = vbcast.lane.b32.xlu0 %v538, %s567
        %v569 = vpop.permute.xlu0 %568
        %s571 = sor.u32 256, 64
        %572 = vbcast.lane.b32.xlu0 %v538, %s571
        %v573 = vpop.permute.xlu0 %572
        %s575 = sor.u32 256, 72
        %576 = vbcast.lane.b32.xlu0 %v538, %s575
        %v577 = vpop.permute.xlu0 %576
        %s579 = sor.u32 256, 80
        %580 = vbcast.lane.b32.xlu0 %v538, %s579
        %v581 = vpop.permute.xlu0 %580
        %s583 = sor.u32 256, 88
        %584 = vbcast.lane.b32.xlu0 %v538, %s583
        %v585 = vpop.permute.xlu0 %584
        %s587 = sor.u32 256, 96
        %588 = vbcast.lane.b32.xlu0 %v538, %s587
        %v589 = vpop.permute.xlu0 %588
        %s591 = sor.u32 256, 104
        %592 = vbcast.lane.b32.xlu0 %v538, %s591
        %v593 = vpop.permute.xlu0 %592
        %s595 = sor.u32 256, 112
        %596 = vbcast.lane.b32.xlu0 %v538, %s595
        %v597 = vpop.permute.xlu0 %596
        %s599 = sor.u32 256, 120
        %600 = vbcast.lane.b32.xlu0 %v538, %s599
        %v601 = vpop.permute.xlu0 %600
        %v602 = vlaneseq
        %v603 = vshrl.u32 %v602, 7
        %v604 = vsub.s32 7, %v603
        %v605 = vrot.slane %v132, %v604
        %607 = vbcast.lane.b32.xlu0 %v605, 256
        %v608 = vpop.permute.xlu0 %607
        %s610 = sor.u32 256, 8
        %611 = vbcast.lane.b32.xlu0 %v605, %s610
        %v612 = vpop.permute.xlu0 %611
        %s614 = sor.u32 256, 16
        %615 = vbcast.lane.b32.xlu0 %v605, %s614
        %v616 = vpop.permute.xlu0 %615
        %s618 = sor.u32 256, 24
        %619 = vbcast.lane.b32.xlu0 %v605, %s618
        %v620 = vpop.permute.xlu0 %619
        %s622 = sor.u32 256, 32
        %623 = vbcast.lane.b32.xlu0 %v605, %s622
        %v624 = vpop.permute.xlu0 %623
        %s626 = sor.u32 256, 40
        %627 = vbcast.lane.b32.xlu0 %v605, %s626
        %v628 = vpop.permute.xlu0 %627
        %s630 = sor.u32 256, 48
        %631 = vbcast.lane.b32.xlu0 %v605, %s630
        %v632 = vpop.permute.xlu0 %631
        %s634 = sor.u32 256, 56
        %635 = vbcast.lane.b32.xlu0 %v605, %s634
        %v636 = vpop.permute.xlu0 %635
        %s638 = sor.u32 256, 64
        %639 = vbcast.lane.b32.xlu0 %v605, %s638
        %v640 = vpop.permute.xlu0 %639
        %s642 = sor.u32 256, 72
        %643 = vbcast.lane.b32.xlu0 %v605, %s642
        %v644 = vpop.permute.xlu0 %643
        %s646 = sor.u32 256, 80
        %647 = vbcast.lane.b32.xlu0 %v605, %s646
        %v648 = vpop.permute.xlu0 %647
        %s650 = sor.u32 256, 88
        %651 = vbcast.lane.b32.xlu0 %v605, %s650
        %v652 = vpop.permute.xlu0 %651
        %s654 = sor.u32 256, 96
        %655 = vbcast.lane.b32.xlu0 %v605, %s654
        %v656 = vpop.permute.xlu0 %655
        %s658 = sor.u32 256, 104
        %659 = vbcast.lane.b32.xlu0 %v605, %s658
        %v660 = vpop.permute.xlu0 %659
        %s662 = sor.u32 256, 112
        %663 = vbcast.lane.b32.xlu0 %v605, %s662
        %v664 = vpop.permute.xlu0 %663
        %s666 = sor.u32 256, 120
        %667 = vbcast.lane.b32.xlu0 %v605, %s666
        %v668 = vpop.permute.xlu0 %667
        %v669 = vcombine.low %v139, %v273
        %v670 = vcombine.high %v139, %v273
        %v672 = vunpack.c.l.s4 1983009808
        %v673 = vunpack.c.0.s8 %v672
        %v674 = vlaneseq
        %v675 = vshrl.u32 %v674, 7
        %v676 = vsub.s32 %v673, %v675
        %v677 = vrot.slane %v669, %v676
        %v679 = vunpack.c.l.s4 1983009808
        %v680 = vunpack.c.0.s8 %v679
        %v681 = vlaneseq
        %v682 = vshrl.u32 %v681, 7
        %v683 = vsub.s32 %v680, %v682
        %v684 = vrot.slane %v670, %v683
        %v685 = vcombine.low %v206, %v340
        %v686 = vcombine.high %v206, %v340
        %v688 = vunpack.c.l.s4 1983009808
        %v689 = vunpack.c.0.s8 %v688
        %v690 = vlaneseq
        %v691 = vshrl.u32 %v690, 7
        %v692 = vsub.s32 %v689, %v691
        %v693 = vrot.slane %v685, %v692
        %v695 = vunpack.c.l.s4 1983009808
        %v696 = vunpack.c.0.s8 %v695
        %v697 = vlaneseq
        %v698 = vshrl.u32 %v697, 7
        %v699 = vsub.s32 %v696, %v698
        %v700 = vrot.slane %v686, %v699
        %v701 = vcombine.low %v407, %v541
        %v702 = vcombine.high %v407, %v541
        %v704 = vunpack.c.l.s4 1983009808
        %v705 = vunpack.c.0.s8 %v704
        %v706 = vlaneseq
        %v707 = vshrl.u32 %v706, 7
        %v708 = vsub.s32 %v705, %v707
        %v709 = vrot.slane %v701, %v708
        %v711 = vunpack.c.l.s4 1983009808
        %v712 = vunpack.c.0.s8 %v711
        %v713 = vlaneseq
        %v714 = vshrl.u32 %v713, 7
        %v715 = vsub.s32 %v712, %v714
        %v716 = vrot.slane %v702, %v715
        %v717 = vcombine.low %v474, %v608
        %v718 = vcombine.high %v474, %v608
        %v720 = vunpack.c.l.s4 1983009808
        %v721 = vunpack.c.0.s8 %v720
        %v722 = vlaneseq
        %v723 = vshrl.u32 %v722, 7
        %v724 = vsub.s32 %v721, %v723
        %v725 = vrot.slane %v717, %v724
        %v727 = vunpack.c.l.s4 1983009808
        %v728 = vunpack.c.0.s8 %v727
        %v729 = vlaneseq
        %v730 = vshrl.u32 %v729, 7
        %v731 = vsub.s32 %v728, %v730
        %v732 = vrot.slane %v718, %v731
        %v733 = vcombine.low %v677, %v693
        %v734 = vcombine.high %v677, %v693
        %v736 = vunpack.c.l.s4 1934713408
        %v737 = vunpack.c.0.s8 %v736
        %v738 = vlaneseq
        %v739 = vshrl.u32 %v738, 7
        %v740 = vsub.s32 %v737, %v739
        %v741 = vrot.slane %v733, %v740
        %v743 = vunpack.c.l.s4 1934713408
        %v744 = vunpack.c.0.s8 %v743
        %v745 = vlaneseq
        %v746 = vshrl.u32 %v745, 7
        %v747 = vsub.s32 %v744, %v746
        %v748 = vrot.slane %v734, %v747
        %v749 = vcombine.low %v684, %v700
        %v750 = vcombine.high %v684, %v700
        %v752 = vunpack.c.l.s4 1934713408
        %v753 = vunpack.c.0.s8 %v752
        %v754 = vlaneseq
        %v755 = vshrl.u32 %v754, 7
        %v756 = vsub.s32 %v753, %v755
        %v757 = vrot.slane %v749, %v756
        %v759 = vunpack.c.l.s4 1934713408
        %v760 = vunpack.c.0.s8 %v759
        %v761 = vlaneseq
        %v762 = vshrl.u32 %v761, 7
        %v763 = vsub.s32 %v760, %v762
        %v764 = vrot.slane %v750, %v763
        %v765 = vcombine.low %v709, %v725
        %v766 = vcombine.high %v709, %v725
        %v768 = vunpack.c.l.s4 1934713408
        %v769 = vunpack.c.0.s8 %v768
        %v770 = vlaneseq
        %v771 = vshrl.u32 %v770, 7
        %v772 = vsub.s32 %v769, %v771
        %v773 = vrot.slane %v765, %v772
        %v775 = vunpack.c.l.s4 1934713408
        %v776 = vunpack.c.0.s8 %v775
        %v777 = vlaneseq
        %v778 = vshrl.u32 %v777, 7
        %v779 = vsub.s32 %v776, %v778
        %v780 = vrot.slane %v766, %v779
        %v781 = vcombine.low %v716, %v732
        %v782 = vcombine.high %v716, %v732
        %v784 = vunpack.c.l.s4 1934713408
        %v785 = vunpack.c.0.s8 %v784
        %v786 = vlaneseq
        %v787 = vshrl.u32 %v786, 7
        %v788 = vsub.s32 %v785, %v787
        %v789 = vrot.slane %v781, %v788
        %v791 = vunpack.c.l.s4 1934713408
        %v792 = vunpack.c.0.s8 %v791
        %v793 = vlaneseq
        %v794 = vshrl.u32 %v793, 7
        %v795 = vsub.s32 %v792, %v794
        %v796 = vrot.slane %v782, %v795
        %v797 = vcombine.low %v741, %v773
        %v798 = vcombine.high %v741, %v773
        %v799 = vcombine.low %v748, %v780
        %v800 = vcombine.high %v748, %v780
        %v801 = vcombine.low %v757, %v789
        %v802 = vcombine.high %v757, %v789
        %v803 = vcombine.low %v764, %v796
        %v804 = vcombine.high %v764, %v796
        %v805 = vcombine.low %v143, %v277
        %v806 = vcombine.high %v143, %v277
        %v808 = vunpack.c.l.s4 1983009808
        %v809 = vunpack.c.0.s8 %v808
        %v810 = vlaneseq
        %v811 = vshrl.u32 %v810, 7
        %v812 = vsub.s32 %v809, %v811
        %v813 = vrot.slane %v805, %v812
        %v815 = vunpack.c.l.s4 1983009808
        %v816 = vunpack.c.0.s8 %v815
        %v817 = vlaneseq
        %v818 = vshrl.u32 %v817, 7
        %v819 = vsub.s32 %v816, %v818
        %v820 = vrot.slane %v806, %v819
        %v821 = vcombine.low %v210, %v344
        %v822 = vcombine.high %v210, %v344
        %v824 = vunpack.c.l.s4 1983009808
        %v825 = vunpack.c.0.s8 %v824
        %v826 = vlaneseq
        %v827 = vshrl.u32 %v826, 7
        %v828 = vsub.s32 %v825, %v827
        %v829 = vrot.slane %v821, %v828
        %v831 = vunpack.c.l.s4 1983009808
        %v832 = vunpack.c.0.s8 %v831
        %v833 = vlaneseq
        %v834 = vshrl.u32 %v833, 7
        %v835 = vsub.s32 %v832, %v834
        %v836 = vrot.slane %v822, %v835
        %v837 = vcombine.low %v411, %v545
        %v838 = vcombine.high %v411, %v545
        %v840 = vunpack.c.l.s4 1983009808
        %v841 = vunpack.c.0.s8 %v840
        %v842 = vlaneseq
        %v843 = vshrl.u32 %v842, 7
        %v844 = vsub.s32 %v841, %v843
        %v845 = vrot.slane %v837, %v844
        %v847 = vunpack.c.l.s4 1983009808
        %v848 = vunpack.c.0.s8 %v847
        %v849 = vlaneseq
        %v850 = vshrl.u32 %v849, 7
        %v851 = vsub.s32 %v848, %v850
        %v852 = vrot.slane %v838, %v851
        %v853 = vcombine.low %v478, %v612
        %v854 = vcombine.high %v478, %v612
        %v856 = vunpack.c.l.s4 1983009808
        %v857 = vunpack.c.0.s8 %v856
        %v858 = vlaneseq
        %v859 = vshrl.u32 %v858, 7
        %v860 = vsub.s32 %v857, %v859
        %v861 = vrot.slane %v853, %v860
        %v863 = vunpack.c.l.s4 1983009808
        %v864 = vunpack.c.0.s8 %v863
        %v865 = vlaneseq
        %v866 = vshrl.u32 %v865, 7
        %v867 = vsub.s32 %v864, %v866
        %v868 = vrot.slane %v854, %v867
        %v869 = vcombine.low %v813, %v829
        %v870 = vcombine.high %v813, %v829
        %v872 = vunpack.c.l.s4 1934713408
        %v873 = vunpack.c.0.s8 %v872
        %v874 = vlaneseq
        %v875 = vshrl.u32 %v874, 7
        %v876 = vsub.s32 %v873, %v875
        %v877 = vrot.slane %v869, %v876
        %v879 = vunpack.c.l.s4 1934713408
        %v880 = vunpack.c.0.s8 %v879
        %v881 = vlaneseq
        %v882 = vshrl.u32 %v881, 7
        %v883 = vsub.s32 %v880, %v882
        %v884 = vrot.slane %v870, %v883
        %v885 = vcombine.low %v820, %v836
        %v886 = vcombine.high %v820, %v836
        %v888 = vunpack.c.l.s4 1934713408
        %v889 = vunpack.c.0.s8 %v888
        %v890 = vlaneseq
        %v891 = vshrl.u32 %v890, 7
        %v892 = vsub.s32 %v889, %v891
        %v893 = vrot.slane %v885, %v892
        %v895 = vunpack.c.l.s4 1934713408
        %v896 = vunpack.c.0.s8 %v895
        %v897 = vlaneseq
        %v898 = vshrl.u32 %v897, 7
        %v899 = vsub.s32 %v896, %v898
        %v900 = vrot.slane %v886, %v899
        %v901 = vcombine.low %v845, %v861
        %v902 = vcombine.high %v845, %v861
        %v904 = vunpack.c.l.s4 1934713408
        %v905 = vunpack.c.0.s8 %v904
        %v906 = vlaneseq
        %v907 = vshrl.u32 %v906, 7
        %v908 = vsub.s32 %v905, %v907
        %v909 = vrot.slane %v901, %v908
        %v911 = vunpack.c.l.s4 1934713408
        %v912 = vunpack.c.0.s8 %v911
        %v913 = vlaneseq
        %v914 = vshrl.u32 %v913, 7
        %v915 = vsub.s32 %v912, %v914
        %v916 = vrot.slane %v902, %v915
        %v917 = vcombine.low %v852, %v868
        %v918 = vcombine.high %v852, %v868
        %v920 = vunpack.c.l.s4 1934713408
        %v921 = vunpack.c.0.s8 %v920
        %v922 = vlaneseq
        %v923 = vshrl.u32 %v922, 7
        %v924 = vsub.s32 %v921, %v923
        %v925 = vrot.slane %v917, %v924
        %v927 = vunpack.c.l.s4 1934713408
        %v928 = vunpack.c.0.s8 %v927
        %v929 = vlaneseq
        %v930 = vshrl.u32 %v929, 7
        %v931 = vsub.s32 %v928, %v930
        %v932 = vrot.slane %v918, %v931
        %v933 = vcombine.low %v877, %v909
        %v934 = vcombine.high %v877, %v909
        %v935 = vcombine.low %v884, %v916
        %v936 = vcombine.high %v884, %v916
        %v937 = vcombine.low %v893, %v925
        %v938 = vcombine.high %v893, %v925
        %v939 = vcombine.low %v900, %v932
        %v940 = vcombine.high %v900, %v932
        %v941 = vcombine.low %v147, %v281
        %v942 = vcombine.high %v147, %v281
        %v944 = vunpack.c.l.s4 1983009808
        %v945 = vunpack.c.0.s8 %v944
        %v946 = vlaneseq
        %v947 = vshrl.u32 %v946, 7
        %v948 = vsub.s32 %v945, %v947
        %v949 = vrot.slane %v941, %v948
        %v951 = vunpack.c.l.s4 1983009808
        %v952 = vunpack.c.0.s8 %v951
        %v953 = vlaneseq
        %v954 = vshrl.u32 %v953, 7
        %v955 = vsub.s32 %v952, %v954
        %v956 = vrot.slane %v942, %v955
        %v957 = vcombine.low %v214, %v348
        %v958 = vcombine.high %v214, %v348
        %v960 = vunpack.c.l.s4 1983009808
        %v961 = vunpack.c.0.s8 %v960
        %v962 = vlaneseq
        %v963 = vshrl.u32 %v962, 7
        %v964 = vsub.s32 %v961, %v963
        %v965 = vrot.slane %v957, %v964
        %v967 = vunpack.c.l.s4 1983009808
        %v968 = vunpack.c.0.s8 %v967
        %v969 = vlaneseq
        %v970 = vshrl.u32 %v969, 7
        %v971 = vsub.s32 %v968, %v970
        %v972 = vrot.slane %v958, %v971
        %v973 = vcombine.low %v415, %v549
        %v974 = vcombine.high %v415, %v549
        %v976 = vunpack.c.l.s4 1983009808
        %v977 = vunpack.c.0.s8 %v976
        %v978 = vlaneseq
        %v979 = vshrl.u32 %v978, 7
        %v980 = vsub.s32 %v977, %v979
        %v981 = vrot.slane %v973, %v980
        %v983 = vunpack.c.l.s4 1983009808
        %v984 = vunpack.c.0.s8 %v983
        %v985 = vlaneseq
        %v986 = vshrl.u32 %v985, 7
        %v987 = vsub.s32 %v984, %v986
        %v988 = vrot.slane %v974, %v987
        %v989 = vcombine.low %v482, %v616
        %v990 = vcombine.high %v482, %v616
        %v992 = vunpack.c.l.s4 1983009808
        %v993 = vunpack.c.0.s8 %v992
        %v994 = vlaneseq
        %v995 = vshrl.u32 %v994, 7
        %v996 = vsub.s32 %v993, %v995
        %v997 = vrot.slane %v989, %v996
        %v999 = vunpack.c.l.s4 1983009808
        %v1000 = vunpack.c.0.s8 %v999
        %v1001 = vlaneseq
        %v1002 = vshrl.u32 %v1001, 7
        %v1003 = vsub.s32 %v1000, %v1002
        %v1004 = vrot.slane %v990, %v1003
        %v1005 = vcombine.low %v949, %v965
        %v1006 = vcombine.high %v949, %v965
        %v1008 = vunpack.c.l.s4 1934713408
        %v1009 = vunpack.c.0.s8 %v1008
        %v1010 = vlaneseq
        %v1011 = vshrl.u32 %v1010, 7
        %v1012 = vsub.s32 %v1009, %v1011
        %v1013 = vrot.slane %v1005, %v1012
        %v1015 = vunpack.c.l.s4 1934713408
        %v1016 = vunpack.c.0.s8 %v1015
        %v1017 = vlaneseq
        %v1018 = vshrl.u32 %v1017, 7
        %v1019 = vsub.s32 %v1016, %v1018
        %v1020 = vrot.slane %v1006, %v1019
        %v1021 = vcombine.low %v956, %v972
        %v1022 = vcombine.high %v956, %v972
        %v1024 = vunpack.c.l.s4 1934713408
        %v1025 = vunpack.c.0.s8 %v1024
        %v1026 = vlaneseq
        %v1027 = vshrl.u32 %v1026, 7
        %v1028 = vsub.s32 %v1025, %v1027
        %v1029 = vrot.slane %v1021, %v1028
        %v1031 = vunpack.c.l.s4 1934713408
        %v1032 = vunpack.c.0.s8 %v1031
        %v1033 = vlaneseq
        %v1034 = vshrl.u32 %v1033, 7
        %v1035 = vsub.s32 %v1032, %v1034
        %v1036 = vrot.slane %v1022, %v1035
        %v1037 = vcombine.low %v981, %v997
        %v1038 = vcombine.high %v981, %v997
        %v1040 = vunpack.c.l.s4 1934713408
        %v1041 = vunpack.c.0.s8 %v1040
        %v1042 = vlaneseq
        %v1043 = vshrl.u32 %v1042, 7
        %v1044 = vsub.s32 %v1041, %v1043
        %v1045 = vrot.slane %v1037, %v1044
        %v1047 = vunpack.c.l.s4 1934713408
        %v1048 = vunpack.c.0.s8 %v1047
        %v1049 = vlaneseq
        %v1050 = vshrl.u32 %v1049, 7
        %v1051 = vsub.s32 %v1048, %v1050
        %v1052 = vrot.slane %v1038, %v1051
        %v1053 = vcombine.low %v988, %v1004
        %v1054 = vcombine.high %v988, %v1004
        %v1056 = vunpack.c.l.s4 1934713408
        %v1057 = vunpack.c.0.s8 %v1056
        %v1058 = vlaneseq
        %v1059 = vshrl.u32 %v1058, 7
        %v1060 = vsub.s32 %v1057, %v1059
        %v1061 = vrot.slane %v1053, %v1060
        %v1063 = vunpack.c.l.s4 1934713408
        %v1064 = vunpack.c.0.s8 %v1063
        %v1065 = vlaneseq
        %v1066 = vshrl.u32 %v1065, 7
        %v1067 = vsub.s32 %v1064, %v1066
        %v1068 = vrot.slane %v1054, %v1067
        %v1069 = vcombine.low %v1013, %v1045
        %v1070 = vcombine.high %v1013, %v1045
        %v1071 = vcombine.low %v1020, %v1052
        %v1072 = vcombine.high %v1020, %v1052
        %v1073 = vcombine.low %v1029, %v1061
        %v1074 = vcombine.high %v1029, %v1061
        %v1075 = vcombine.low %v1036, %v1068
        %v1076 = vcombine.high %v1036, %v1068
        %v1077 = vcombine.low %v151, %v285
        %v1078 = vcombine.high %v151, %v285
        %v1080 = vunpack.c.l.s4 1983009808
        %v1081 = vunpack.c.0.s8 %v1080
        %v1082 = vlaneseq
        %v1083 = vshrl.u32 %v1082, 7
        %v1084 = vsub.s32 %v1081, %v1083
        %v1085 = vrot.slane %v1077, %v1084
        %v1087 = vunpack.c.l.s4 1983009808
        %v1088 = vunpack.c.0.s8 %v1087
        %v1089 = vlaneseq
        %v1090 = vshrl.u32 %v1089, 7
        %v1091 = vsub.s32 %v1088, %v1090
        %v1092 = vrot.slane %v1078, %v1091
        %v1093 = vcombine.low %v218, %v352
        %v1094 = vcombine.high %v218, %v352
        %v1096 = vunpack.c.l.s4 1983009808
        %v1097 = vunpack.c.0.s8 %v1096
        %v1098 = vlaneseq
        %v1099 = vshrl.u32 %v1098, 7
        %v1100 = vsub.s32 %v1097, %v1099
        %v1101 = vrot.slane %v1093, %v1100
        %v1103 = vunpack.c.l.s4 1983009808
        %v1104 = vunpack.c.0.s8 %v1103
        %v1105 = vlaneseq
        %v1106 = vshrl.u32 %v1105, 7
        %v1107 = vsub.s32 %v1104, %v1106
        %v1108 = vrot.slane %v1094, %v1107
        %v1109 = vcombine.low %v419, %v553
        %v1110 = vcombine.high %v419, %v553
        %v1112 = vunpack.c.l.s4 1983009808
        %v1113 = vunpack.c.0.s8 %v1112
        %v1114 = vlaneseq
        %v1115 = vshrl.u32 %v1114, 7
        %v1116 = vsub.s32 %v1113, %v1115
        %v1117 = vrot.slane %v1109, %v1116
        %v1119 = vunpack.c.l.s4 1983009808
        %v1120 = vunpack.c.0.s8 %v1119
        %v1121 = vlaneseq
        %v1122 = vshrl.u32 %v1121, 7
        %v1123 = vsub.s32 %v1120, %v1122
        %v1124 = vrot.slane %v1110, %v1123
        %v1125 = vcombine.low %v486, %v620
        %v1126 = vcombine.high %v486, %v620
        %v1128 = vunpack.c.l.s4 1983009808
        %v1129 = vunpack.c.0.s8 %v1128
        %v1130 = vlaneseq
        %v1131 = vshrl.u32 %v1130, 7
        %v1132 = vsub.s32 %v1129, %v1131
        %v1133 = vrot.slane %v1125, %v1132
        %v1135 = vunpack.c.l.s4 1983009808
        %v1136 = vunpack.c.0.s8 %v1135
        %v1137 = vlaneseq
        %v1138 = vshrl.u32 %v1137, 7
        %v1139 = vsub.s32 %v1136, %v1138
        %v1140 = vrot.slane %v1126, %v1139
        %v1141 = vcombine.low %v1085, %v1101
        %v1142 = vcombine.high %v1085, %v1101
        %v1144 = vunpack.c.l.s4 1934713408
        %v1145 = vunpack.c.0.s8 %v1144
        %v1146 = vlaneseq
        %v1147 = vshrl.u32 %v1146, 7
        %v1148 = vsub.s32 %v1145, %v1147
        %v1149 = vrot.slane %v1141, %v1148
        %v1151 = vunpack.c.l.s4 1934713408
        %v1152 = vunpack.c.0.s8 %v1151
        %v1153 = vlaneseq
        %v1154 = vshrl.u32 %v1153, 7
        %v1155 = vsub.s32 %v1152, %v1154
        %v1156 = vrot.slane %v1142, %v1155
        %v1157 = vcombine.low %v1092, %v1108
        %v1158 = vcombine.high %v1092, %v1108
        %v1160 = vunpack.c.l.s4 1934713408
        %v1161 = vunpack.c.0.s8 %v1160
        %v1162 = vlaneseq
        %v1163 = vshrl.u32 %v1162, 7
        %v1164 = vsub.s32 %v1161, %v1163
        %v1165 = vrot.slane %v1157, %v1164
        %v1167 = vunpack.c.l.s4 1934713408
        %v1168 = vunpack.c.0.s8 %v1167
        %v1169 = vlaneseq
        %v1170 = vshrl.u32 %v1169, 7
        %v1171 = vsub.s32 %v1168, %v1170
        %v1172 = vrot.slane %v1158, %v1171
        %v1173 = vcombine.low %v1117, %v1133
        %v1174 = vcombine.high %v1117, %v1133
        %v1176 = vunpack.c.l.s4 1934713408
        %v1177 = vunpack.c.0.s8 %v1176
        %v1178 = vlaneseq
        %v1179 = vshrl.u32 %v1178, 7
        %v1180 = vsub.s32 %v1177, %v1179
        %v1181 = vrot.slane %v1173, %v1180
        %v1183 = vunpack.c.l.s4 1934713408
        %v1184 = vunpack.c.0.s8 %v1183
        %v1185 = vlaneseq
        %v1186 = vshrl.u32 %v1185, 7
        %v1187 = vsub.s32 %v1184, %v1186
        %v1188 = vrot.slane %v1174, %v1187
        %v1189 = vcombine.low %v1124, %v1140
        %v1190 = vcombine.high %v1124, %v1140
        %v1192 = vunpack.c.l.s4 1934713408
        %v1193 = vunpack.c.0.s8 %v1192
        %v1194 = vlaneseq
        %v1195 = vshrl.u32 %v1194, 7
        %v1196 = vsub.s32 %v1193, %v1195
        %v1197 = vrot.slane %v1189, %v1196
        %v1199 = vunpack.c.l.s4 1934713408
        %v1200 = vunpack.c.0.s8 %v1199
        %v1201 = vlaneseq
        %v1202 = vshrl.u32 %v1201, 7
        %v1203 = vsub.s32 %v1200, %v1202
        %v1204 = vrot.slane %v1190, %v1203
        %v1205 = vcombine.low %v1149, %v1181
        %v1206 = vcombine.high %v1149, %v1181
        %v1207 = vcombine.low %v1156, %v1188
        %v1208 = vcombine.high %v1156, %v1188
        %v1209 = vcombine.low %v1165, %v1197
        %v1210 = vcombine.high %v1165, %v1197
        %v1211 = vcombine.low %v1172, %v1204
        %v1212 = vcombine.high %v1172, %v1204
        %v1213 = vcombine.low %v155, %v289
        %v1214 = vcombine.high %v155, %v289
        %v1216 = vunpack.c.l.s4 1983009808
        %v1217 = vunpack.c.0.s8 %v1216
        %v1218 = vlaneseq
        %v1219 = vshrl.u32 %v1218, 7
        %v1220 = vsub.s32 %v1217, %v1219
        %v1221 = vrot.slane %v1213, %v1220
        %v1223 = vunpack.c.l.s4 1983009808
        %v1224 = vunpack.c.0.s8 %v1223
        %v1225 = vlaneseq
        %v1226 = vshrl.u32 %v1225, 7
        %v1227 = vsub.s32 %v1224, %v1226
        %v1228 = vrot.slane %v1214, %v1227
        %v1229 = vcombine.low %v222, %v356
        %v1230 = vcombine.high %v222, %v356
        %v1232 = vunpack.c.l.s4 1983009808
        %v1233 = vunpack.c.0.s8 %v1232
        %v1234 = vlaneseq
        %v1235 = vshrl.u32 %v1234, 7
        %v1236 = vsub.s32 %v1233, %v1235
        %v1237 = vrot.slane %v1229, %v1236
        %v1239 = vunpack.c.l.s4 1983009808
        %v1240 = vunpack.c.0.s8 %v1239
        %v1241 = vlaneseq
        %v1242 = vshrl.u32 %v1241, 7
        %v1243 = vsub.s32 %v1240, %v1242
        %v1244 = vrot.slane %v1230, %v1243
        %v1245 = vcombine.low %v423, %v557
        %v1246 = vcombine.high %v423, %v557
        %v1248 = vunpack.c.l.s4 1983009808
        %v1249 = vunpack.c.0.s8 %v1248
        %v1250 = vlaneseq
        %v1251 = vshrl.u32 %v1250, 7
        %v1252 = vsub.s32 %v1249, %v1251
        %v1253 = vrot.slane %v1245, %v1252
        %v1255 = vunpack.c.l.s4 1983009808
        %v1256 = vunpack.c.0.s8 %v1255
        %v1257 = vlaneseq
        %v1258 = vshrl.u32 %v1257, 7
        %v1259 = vsub.s32 %v1256, %v1258
        %v1260 = vrot.slane %v1246, %v1259
        %v1261 = vcombine.low %v490, %v624
        %v1262 = vcombine.high %v490, %v624
        %v1264 = vunpack.c.l.s4 1983009808
        %v1265 = vunpack.c.0.s8 %v1264
        %v1266 = vlaneseq
        %v1267 = vshrl.u32 %v1266, 7
        %v1268 = vsub.s32 %v1265, %v1267
        %v1269 = vrot.slane %v1261, %v1268
        %v1271 = vunpack.c.l.s4 1983009808
        %v1272 = vunpack.c.0.s8 %v1271
        %v1273 = vlaneseq
        %v1274 = vshrl.u32 %v1273, 7
        %v1275 = vsub.s32 %v1272, %v1274
        %v1276 = vrot.slane %v1262, %v1275
        %v1277 = vcombine.low %v1221, %v1237
        %v1278 = vcombine.high %v1221, %v1237
        %v1280 = vunpack.c.l.s4 1934713408
        %v1281 = vunpack.c.0.s8 %v1280
        %v1282 = vlaneseq
        %v1283 = vshrl.u32 %v1282, 7
        %v1284 = vsub.s32 %v1281, %v1283
        %v1285 = vrot.slane %v1277, %v1284
        %v1287 = vunpack.c.l.s4 1934713408
        %v1288 = vunpack.c.0.s8 %v1287
        %v1289 = vlaneseq
        %v1290 = vshrl.u32 %v1289, 7
        %v1291 = vsub.s32 %v1288, %v1290
        %v1292 = vrot.slane %v1278, %v1291
        %v1293 = vcombine.low %v1228, %v1244
        %v1294 = vcombine.high %v1228, %v1244
        %v1296 = vunpack.c.l.s4 1934713408
        %v1297 = vunpack.c.0.s8 %v1296
        %v1298 = vlaneseq
        %v1299 = vshrl.u32 %v1298, 7
        %v1300 = vsub.s32 %v1297, %v1299
        %v1301 = vrot.slane %v1293, %v1300
        %v1303 = vunpack.c.l.s4 1934713408
        %v1304 = vunpack.c.0.s8 %v1303
        %v1305 = vlaneseq
        %v1306 = vshrl.u32 %v1305, 7
        %v1307 = vsub.s32 %v1304, %v1306
        %v1308 = vrot.slane %v1294, %v1307
        %v1309 = vcombine.low %v1253, %v1269
        %v1310 = vcombine.high %v1253, %v1269
        %v1312 = vunpack.c.l.s4 1934713408
        %v1313 = vunpack.c.0.s8 %v1312
        %v1314 = vlaneseq
        %v1315 = vshrl.u32 %v1314, 7
        %v1316 = vsub.s32 %v1313, %v1315
        %v1317 = vrot.slane %v1309, %v1316
        %v1319 = vunpack.c.l.s4 1934713408
        %v1320 = vunpack.c.0.s8 %v1319
        %v1321 = vlaneseq
        %v1322 = vshrl.u32 %v1321, 7
        %v1323 = vsub.s32 %v1320, %v1322
        %v1324 = vrot.slane %v1310, %v1323
        %v1325 = vcombine.low %v1260, %v1276
        %v1326 = vcombine.high %v1260, %v1276
        %v1328 = vunpack.c.l.s4 1934713408
        %v1329 = vunpack.c.0.s8 %v1328
        %v1330 = vlaneseq
        %v1331 = vshrl.u32 %v1330, 7
        %v1332 = vsub.s32 %v1329, %v1331
        %v1333 = vrot.slane %v1325, %v1332
        %v1335 = vunpack.c.l.s4 1934713408
        %v1336 = vunpack.c.0.s8 %v1335
        %v1337 = vlaneseq
        %v1338 = vshrl.u32 %v1337, 7
        %v1339 = vsub.s32 %v1336, %v1338
        %v1340 = vrot.slane %v1326, %v1339
        %v1341 = vcombine.low %v1285, %v1317
        %v1342 = vcombine.high %v1285, %v1317
        %v1343 = vcombine.low %v1292, %v1324
        %v1344 = vcombine.high %v1292, %v1324
        %v1345 = vcombine.low %v1301, %v1333
        %v1346 = vcombine.high %v1301, %v1333
        %v1347 = vcombine.low %v1308, %v1340
        %v1348 = vcombine.high %v1308, %v1340
        %v1349 = vcombine.low %v159, %v293
        %v1350 = vcombine.high %v159, %v293
        %v1352 = vunpack.c.l.s4 1983009808
        %v1353 = vunpack.c.0.s8 %v1352
        %v1354 = vlaneseq
        %v1355 = vshrl.u32 %v1354, 7
        %v1356 = vsub.s32 %v1353, %v1355
        %v1357 = vrot.slane %v1349, %v1356
        %v1359 = vunpack.c.l.s4 1983009808
        %v1360 = vunpack.c.0.s8 %v1359
        %v1361 = vlaneseq
        %v1362 = vshrl.u32 %v1361, 7
        %v1363 = vsub.s32 %v1360, %v1362
        %v1364 = vrot.slane %v1350, %v1363
        %v1365 = vcombine.low %v226, %v360
        %v1366 = vcombine.high %v226, %v360
        %v1368 = vunpack.c.l.s4 1983009808
        %v1369 = vunpack.c.0.s8 %v1368
        %v1370 = vlaneseq
        %v1371 = vshrl.u32 %v1370, 7
        %v1372 = vsub.s32 %v1369, %v1371
        %v1373 = vrot.slane %v1365, %v1372
        %v1375 = vunpack.c.l.s4 1983009808
        %v1376 = vunpack.c.0.s8 %v1375
        %v1377 = vlaneseq
        %v1378 = vshrl.u32 %v1377, 7
        %v1379 = vsub.s32 %v1376, %v1378
        %v1380 = vrot.slane %v1366, %v1379
        %v1381 = vcombine.low %v427, %v561
        %v1382 = vcombine.high %v427, %v561
        %v1384 = vunpack.c.l.s4 1983009808
        %v1385 = vunpack.c.0.s8 %v1384
        %v1386 = vlaneseq
        %v1387 = vshrl.u32 %v1386, 7
        %v1388 = vsub.s32 %v1385, %v1387
        %v1389 = vrot.slane %v1381, %v1388
        %v1391 = vunpack.c.l.s4 1983009808
        %v1392 = vunpack.c.0.s8 %v1391
        %v1393 = vlaneseq
        %v1394 = vshrl.u32 %v1393, 7
        %v1395 = vsub.s32 %v1392, %v1394
        %v1396 = vrot.slane %v1382, %v1395
        %v1397 = vcombine.low %v494, %v628
        %v1398 = vcombine.high %v494, %v628
        %v1400 = vunpack.c.l.s4 1983009808
        %v1401 = vunpack.c.0.s8 %v1400
        %v1402 = vlaneseq
        %v1403 = vshrl.u32 %v1402, 7
        %v1404 = vsub.s32 %v1401, %v1403
        %v1405 = vrot.slane %v1397, %v1404
        %v1407 = vunpack.c.l.s4 1983009808
        %v1408 = vunpack.c.0.s8 %v1407
        %v1409 = vlaneseq
        %v1410 = vshrl.u32 %v1409, 7
        %v1411 = vsub.s32 %v1408, %v1410
        %v1412 = vrot.slane %v1398, %v1411
        %v1413 = vcombine.low %v1357, %v1373
        %v1414 = vcombine.high %v1357, %v1373
        %v1416 = vunpack.c.l.s4 1934713408
        %v1417 = vunpack.c.0.s8 %v1416
        %v1418 = vlaneseq
        %v1419 = vshrl.u32 %v1418, 7
        %v1420 = vsub.s32 %v1417, %v1419
        %v1421 = vrot.slane %v1413, %v1420
        %v1423 = vunpack.c.l.s4 1934713408
        %v1424 = vunpack.c.0.s8 %v1423
        %v1425 = vlaneseq
        %v1426 = vshrl.u32 %v1425, 7
        %v1427 = vsub.s32 %v1424, %v1426
        %v1428 = vrot.slane %v1414, %v1427
        %v1429 = vcombine.low %v1364, %v1380
        %v1430 = vcombine.high %v1364, %v1380
        %v1432 = vunpack.c.l.s4 1934713408
        %v1433 = vunpack.c.0.s8 %v1432
        %v1434 = vlaneseq
        %v1435 = vshrl.u32 %v1434, 7
        %v1436 = vsub.s32 %v1433, %v1435
        %v1437 = vrot.slane %v1429, %v1436
        %v1439 = vunpack.c.l.s4 1934713408
        %v1440 = vunpack.c.0.s8 %v1439
        %v1441 = vlaneseq
        %v1442 = vshrl.u32 %v1441, 7
        %v1443 = vsub.s32 %v1440, %v1442
        %v1444 = vrot.slane %v1430, %v1443
        %v1445 = vcombine.low %v1389, %v1405
        %v1446 = vcombine.high %v1389, %v1405
        %v1448 = vunpack.c.l.s4 1934713408
        %v1449 = vunpack.c.0.s8 %v1448
        %v1450 = vlaneseq
        %v1451 = vshrl.u32 %v1450, 7
        %v1452 = vsub.s32 %v1449, %v1451
        %v1453 = vrot.slane %v1445, %v1452
        %v1455 = vunpack.c.l.s4 1934713408
        %v1456 = vunpack.c.0.s8 %v1455
        %v1457 = vlaneseq
        %v1458 = vshrl.u32 %v1457, 7
        %v1459 = vsub.s32 %v1456, %v1458
        %v1460 = vrot.slane %v1446, %v1459
        %v1461 = vcombine.low %v1396, %v1412
        %v1462 = vcombine.high %v1396, %v1412
        %v1464 = vunpack.c.l.s4 1934713408
        %v1465 = vunpack.c.0.s8 %v1464
        %v1466 = vlaneseq
        %v1467 = vshrl.u32 %v1466, 7
        %v1468 = vsub.s32 %v1465, %v1467
        %v1469 = vrot.slane %v1461, %v1468
        %v1471 = vunpack.c.l.s4 1934713408
        %v1472 = vunpack.c.0.s8 %v1471
        %v1473 = vlaneseq
        %v1474 = vshrl.u32 %v1473, 7
        %v1475 = vsub.s32 %v1472, %v1474
        %v1476 = vrot.slane %v1462, %v1475
        %v1477 = vcombine.low %v1421, %v1453
        %v1478 = vcombine.high %v1421, %v1453
        %v1479 = vcombine.low %v1428, %v1460
        %v1480 = vcombine.high %v1428, %v1460
        %v1481 = vcombine.low %v1437, %v1469
        %v1482 = vcombine.high %v1437, %v1469
        %v1483 = vcombine.low %v1444, %v1476
        %v1484 = vcombine.high %v1444, %v1476
        %v1485 = vcombine.low %v163, %v297
        %v1486 = vcombine.high %v163, %v297
        %v1488 = vunpack.c.l.s4 1983009808
        %v1489 = vunpack.c.0.s8 %v1488
        %v1490 = vlaneseq
        %v1491 = vshrl.u32 %v1490, 7
        %v1492 = vsub.s32 %v1489, %v1491
        %v1493 = vrot.slane %v1485, %v1492
        %v1495 = vunpack.c.l.s4 1983009808
        %v1496 = vunpack.c.0.s8 %v1495
        %v1497 = vlaneseq
        %v1498 = vshrl.u32 %v1497, 7
        %v1499 = vsub.s32 %v1496, %v1498
        %v1500 = vrot.slane %v1486, %v1499
        %v1501 = vcombine.low %v230, %v364
        %v1502 = vcombine.high %v230, %v364
        %v1504 = vunpack.c.l.s4 1983009808
        %v1505 = vunpack.c.0.s8 %v1504
        %v1506 = vlaneseq
        %v1507 = vshrl.u32 %v1506, 7
        %v1508 = vsub.s32 %v1505, %v1507
        %v1509 = vrot.slane %v1501, %v1508
        %v1511 = vunpack.c.l.s4 1983009808
        %v1512 = vunpack.c.0.s8 %v1511
        %v1513 = vlaneseq
        %v1514 = vshrl.u32 %v1513, 7
        %v1515 = vsub.s32 %v1512, %v1514
        %v1516 = vrot.slane %v1502, %v1515
        %v1517 = vcombine.low %v431, %v565
        %v1518 = vcombine.high %v431, %v565
        %v1520 = vunpack.c.l.s4 1983009808
        %v1521 = vunpack.c.0.s8 %v1520
        %v1522 = vlaneseq
        %v1523 = vshrl.u32 %v1522, 7
        %v1524 = vsub.s32 %v1521, %v1523
        %v1525 = vrot.slane %v1517, %v1524
        %v1527 = vunpack.c.l.s4 1983009808
        %v1528 = vunpack.c.0.s8 %v1527
        %v1529 = vlaneseq
        %v1530 = vshrl.u32 %v1529, 7
        %v1531 = vsub.s32 %v1528, %v1530
        %v1532 = vrot.slane %v1518, %v1531
        %v1533 = vcombine.low %v498, %v632
        %v1534 = vcombine.high %v498, %v632
        %v1536 = vunpack.c.l.s4 1983009808
        %v1537 = vunpack.c.0.s8 %v1536
        %v1538 = vlaneseq
        %v1539 = vshrl.u32 %v1538, 7
        %v1540 = vsub.s32 %v1537, %v1539
        %v1541 = vrot.slane %v1533, %v1540
        %v1543 = vunpack.c.l.s4 1983009808
        %v1544 = vunpack.c.0.s8 %v1543
        %v1545 = vlaneseq
        %v1546 = vshrl.u32 %v1545, 7
        %v1547 = vsub.s32 %v1544, %v1546
        %v1548 = vrot.slane %v1534, %v1547
        %v1549 = vcombine.low %v1493, %v1509
        %v1550 = vcombine.high %v1493, %v1509
        %v1552 = vunpack.c.l.s4 1934713408
        %v1553 = vunpack.c.0.s8 %v1552
        %v1554 = vlaneseq
        %v1555 = vshrl.u32 %v1554, 7
        %v1556 = vsub.s32 %v1553, %v1555
        %v1557 = vrot.slane %v1549, %v1556
        %v1559 = vunpack.c.l.s4 1934713408
        %v1560 = vunpack.c.0.s8 %v1559
        %v1561 = vlaneseq
        %v1562 = vshrl.u32 %v1561, 7
        %v1563 = vsub.s32 %v1560, %v1562
        %v1564 = vrot.slane %v1550, %v1563
        %v1565 = vcombine.low %v1500, %v1516
        %v1566 = vcombine.high %v1500, %v1516
        %v1568 = vunpack.c.l.s4 1934713408
        %v1569 = vunpack.c.0.s8 %v1568
        %v1570 = vlaneseq
        %v1571 = vshrl.u32 %v1570, 7
        %v1572 = vsub.s32 %v1569, %v1571
        %v1573 = vrot.slane %v1565, %v1572
        %v1575 = vunpack.c.l.s4 1934713408
        %v1576 = vunpack.c.0.s8 %v1575
        %v1577 = vlaneseq
        %v1578 = vshrl.u32 %v1577, 7
        %v1579 = vsub.s32 %v1576, %v1578
        %v1580 = vrot.slane %v1566, %v1579
        %v1581 = vcombine.low %v1525, %v1541
        %v1582 = vcombine.high %v1525, %v1541
        %v1584 = vunpack.c.l.s4 1934713408
        %v1585 = vunpack.c.0.s8 %v1584
        %v1586 = vlaneseq
        %v1587 = vshrl.u32 %v1586, 7
        %v1588 = vsub.s32 %v1585, %v1587
        %v1589 = vrot.slane %v1581, %v1588
        %v1591 = vunpack.c.l.s4 1934713408
        %v1592 = vunpack.c.0.s8 %v1591
        %v1593 = vlaneseq
        %v1594 = vshrl.u32 %v1593, 7
        %v1595 = vsub.s32 %v1592, %v1594
        %v1596 = vrot.slane %v1582, %v1595
        %v1597 = vcombine.low %v1532, %v1548
        %v1598 = vcombine.high %v1532, %v1548
        %v1600 = vunpack.c.l.s4 1934713408
        %v1601 = vunpack.c.0.s8 %v1600
        %v1602 = vlaneseq
        %v1603 = vshrl.u32 %v1602, 7
        %v1604 = vsub.s32 %v1601, %v1603
        %v1605 = vrot.slane %v1597, %v1604
        %v1607 = vunpack.c.l.s4 1934713408
        %v1608 = vunpack.c.0.s8 %v1607
        %v1609 = vlaneseq
        %v1610 = vshrl.u32 %v1609, 7
        %v1611 = vsub.s32 %v1608, %v1610
        %v1612 = vrot.slane %v1598, %v1611
        %v1613 = vcombine.low %v1557, %v1589
        %v1614 = vcombine.high %v1557, %v1589
        %v1615 = vcombine.low %v1564, %v1596
        %v1616 = vcombine.high %v1564, %v1596
        %v1617 = vcombine.low %v1573, %v1605
        %v1618 = vcombine.high %v1573, %v1605
        %v1619 = vcombine.low %v1580, %v1612
        %v1620 = vcombine.high %v1580, %v1612
        %v1621 = vcombine.low %v167, %v301
        %v1622 = vcombine.high %v167, %v301
        %v1624 = vunpack.c.l.s4 1983009808
        %v1625 = vunpack.c.0.s8 %v1624
        %v1626 = vlaneseq
        %v1627 = vshrl.u32 %v1626, 7
        %v1628 = vsub.s32 %v1625, %v1627
        %v1629 = vrot.slane %v1621, %v1628
        %v1631 = vunpack.c.l.s4 1983009808
        %v1632 = vunpack.c.0.s8 %v1631
        %v1633 = vlaneseq
        %v1634 = vshrl.u32 %v1633, 7
        %v1635 = vsub.s32 %v1632, %v1634
        %v1636 = vrot.slane %v1622, %v1635
        %v1637 = vcombine.low %v234, %v368
        %v1638 = vcombine.high %v234, %v368
        %v1640 = vunpack.c.l.s4 1983009808
        %v1641 = vunpack.c.0.s8 %v1640
        %v1642 = vlaneseq
        %v1643 = vshrl.u32 %v1642, 7
        %v1644 = vsub.s32 %v1641, %v1643
        %v1645 = vrot.slane %v1637, %v1644
        %v1647 = vunpack.c.l.s4 1983009808
        %v1648 = vunpack.c.0.s8 %v1647
        %v1649 = vlaneseq
        %v1650 = vshrl.u32 %v1649, 7
        %v1651 = vsub.s32 %v1648, %v1650
        %v1652 = vrot.slane %v1638, %v1651
        %v1653 = vcombine.low %v435, %v569
        %v1654 = vcombine.high %v435, %v569
        %v1656 = vunpack.c.l.s4 1983009808
        %v1657 = vunpack.c.0.s8 %v1656
        %v1658 = vlaneseq
        %v1659 = vshrl.u32 %v1658, 7
        %v1660 = vsub.s32 %v1657, %v1659
        %v1661 = vrot.slane %v1653, %v1660
        %v1663 = vunpack.c.l.s4 1983009808
        %v1664 = vunpack.c.0.s8 %v1663
        %v1665 = vlaneseq
        %v1666 = vshrl.u32 %v1665, 7
        %v1667 = vsub.s32 %v1664, %v1666
        %v1668 = vrot.slane %v1654, %v1667
        %v1669 = vcombine.low %v502, %v636
        %v1670 = vcombine.high %v502, %v636
        %v1672 = vunpack.c.l.s4 1983009808
        %v1673 = vunpack.c.0.s8 %v1672
        %v1674 = vlaneseq
        %v1675 = vshrl.u32 %v1674, 7
        %v1676 = vsub.s32 %v1673, %v1675
        %v1677 = vrot.slane %v1669, %v1676
        %v1679 = vunpack.c.l.s4 1983009808
        %v1680 = vunpack.c.0.s8 %v1679
        %v1681 = vlaneseq
        %v1682 = vshrl.u32 %v1681, 7
        %v1683 = vsub.s32 %v1680, %v1682
        %v1684 = vrot.slane %v1670, %v1683
        %v1685 = vcombine.low %v1629, %v1645
        %v1686 = vcombine.high %v1629, %v1645
        %v1688 = vunpack.c.l.s4 1934713408
        %v1689 = vunpack.c.0.s8 %v1688
        %v1690 = vlaneseq
        %v1691 = vshrl.u32 %v1690, 7
        %v1692 = vsub.s32 %v1689, %v1691
        %v1693 = vrot.slane %v1685, %v1692
        %v1695 = vunpack.c.l.s4 1934713408
        %v1696 = vunpack.c.0.s8 %v1695
        %v1697 = vlaneseq
        %v1698 = vshrl.u32 %v1697, 7
        %v1699 = vsub.s32 %v1696, %v1698
        %v1700 = vrot.slane %v1686, %v1699
        %v1701 = vcombine.low %v1636, %v1652
        %v1702 = vcombine.high %v1636, %v1652
        %v1704 = vunpack.c.l.s4 1934713408
        %v1705 = vunpack.c.0.s8 %v1704
        %v1706 = vlaneseq
        %v1707 = vshrl.u32 %v1706, 7
        %v1708 = vsub.s32 %v1705, %v1707
        %v1709 = vrot.slane %v1701, %v1708
        %v1711 = vunpack.c.l.s4 1934713408
        %v1712 = vunpack.c.0.s8 %v1711
        %v1713 = vlaneseq
        %v1714 = vshrl.u32 %v1713, 7
        %v1715 = vsub.s32 %v1712, %v1714
        %v1716 = vrot.slane %v1702, %v1715
        %v1717 = vcombine.low %v1661, %v1677
        %v1718 = vcombine.high %v1661, %v1677
        %v1720 = vunpack.c.l.s4 1934713408
        %v1721 = vunpack.c.0.s8 %v1720
        %v1722 = vlaneseq
        %v1723 = vshrl.u32 %v1722, 7
        %v1724 = vsub.s32 %v1721, %v1723
        %v1725 = vrot.slane %v1717, %v1724
        %v1727 = vunpack.c.l.s4 1934713408
        %v1728 = vunpack.c.0.s8 %v1727
        %v1729 = vlaneseq
        %v1730 = vshrl.u32 %v1729, 7
        %v1731 = vsub.s32 %v1728, %v1730
        %v1732 = vrot.slane %v1718, %v1731
        %v1733 = vcombine.low %v1668, %v1684
        %v1734 = vcombine.high %v1668, %v1684
        %v1736 = vunpack.c.l.s4 1934713408
        %v1737 = vunpack.c.0.s8 %v1736
        %v1738 = vlaneseq
        %v1739 = vshrl.u32 %v1738, 7
        %v1740 = vsub.s32 %v1737, %v1739
        %v1741 = vrot.slane %v1733, %v1740
        %v1743 = vunpack.c.l.s4 1934713408
        %v1744 = vunpack.c.0.s8 %v1743
        %v1745 = vlaneseq
        %v1746 = vshrl.u32 %v1745, 7
        %v1747 = vsub.s32 %v1744, %v1746
        %v1748 = vrot.slane %v1734, %v1747
        %v1749 = vcombine.low %v1693, %v1725
        %v1750 = vcombine.high %v1693, %v1725
        %v1751 = vcombine.low %v1700, %v1732
        %v1752 = vcombine.high %v1700, %v1732
        %v1753 = vcombine.low %v1709, %v1741
        %v1754 = vcombine.high %v1709, %v1741
        %v1755 = vcombine.low %v1716, %v1748
        %v1756 = vcombine.high %v1716, %v1748
        %v1757 = vcombine.low %v171, %v305
        %v1758 = vcombine.high %v171, %v305
        %v1760 = vunpack.c.l.s4 1983009808
        %v1761 = vunpack.c.0.s8 %v1760
        %v1762 = vlaneseq
        %v1763 = vshrl.u32 %v1762, 7
        %v1764 = vsub.s32 %v1761, %v1763
        %v1765 = vrot.slane %v1757, %v1764
        %v1767 = vunpack.c.l.s4 1983009808
        %v1768 = vunpack.c.0.s8 %v1767
        %v1769 = vlaneseq
        %v1770 = vshrl.u32 %v1769, 7
        %v1771 = vsub.s32 %v1768, %v1770
        %v1772 = vrot.slane %v1758, %v1771
        %v1773 = vcombine.low %v238, %v372
        %v1774 = vcombine.high %v238, %v372
        %v1776 = vunpack.c.l.s4 1983009808
        %v1777 = vunpack.c.0.s8 %v1776
        %v1778 = vlaneseq
        %v1779 = vshrl.u32 %v1778, 7
        %v1780 = vsub.s32 %v1777, %v1779
        %v1781 = vrot.slane %v1773, %v1780
        %v1783 = vunpack.c.l.s4 1983009808
        %v1784 = vunpack.c.0.s8 %v1783
        %v1785 = vlaneseq
        %v1786 = vshrl.u32 %v1785, 7
        %v1787 = vsub.s32 %v1784, %v1786
        %v1788 = vrot.slane %v1774, %v1787
        %v1789 = vcombine.low %v439, %v573
        %v1790 = vcombine.high %v439, %v573
        %v1792 = vunpack.c.l.s4 1983009808
        %v1793 = vunpack.c.0.s8 %v1792
        %v1794 = vlaneseq
        %v1795 = vshrl.u32 %v1794, 7
        %v1796 = vsub.s32 %v1793, %v1795
        %v1797 = vrot.slane %v1789, %v1796
        %v1799 = vunpack.c.l.s4 1983009808
        %v1800 = vunpack.c.0.s8 %v1799
        %v1801 = vlaneseq
        %v1802 = vshrl.u32 %v1801, 7
        %v1803 = vsub.s32 %v1800, %v1802
        %v1804 = vrot.slane %v1790, %v1803
        %v1805 = vcombine.low %v506, %v640
        %v1806 = vcombine.high %v506, %v640
        %v1808 = vunpack.c.l.s4 1983009808
        %v1809 = vunpack.c.0.s8 %v1808
        %v1810 = vlaneseq
        %v1811 = vshrl.u32 %v1810, 7
        %v1812 = vsub.s32 %v1809, %v1811
        %v1813 = vrot.slane %v1805, %v1812
        %v1815 = vunpack.c.l.s4 1983009808
        %v1816 = vunpack.c.0.s8 %v1815
        %v1817 = vlaneseq
        %v1818 = vshrl.u32 %v1817, 7
        %v1819 = vsub.s32 %v1816, %v1818
        %v1820 = vrot.slane %v1806, %v1819
        %v1821 = vcombine.low %v1765, %v1781
        %v1822 = vcombine.high %v1765, %v1781
        %v1824 = vunpack.c.l.s4 1934713408
        %v1825 = vunpack.c.0.s8 %v1824
        %v1826 = vlaneseq
        %v1827 = vshrl.u32 %v1826, 7
        %v1828 = vsub.s32 %v1825, %v1827
        %v1829 = vrot.slane %v1821, %v1828
        %v1831 = vunpack.c.l.s4 1934713408
        %v1832 = vunpack.c.0.s8 %v1831
        %v1833 = vlaneseq
        %v1834 = vshrl.u32 %v1833, 7
        %v1835 = vsub.s32 %v1832, %v1834
        %v1836 = vrot.slane %v1822, %v1835
        %v1837 = vcombine.low %v1772, %v1788
        %v1838 = vcombine.high %v1772, %v1788
        %v1840 = vunpack.c.l.s4 1934713408
        %v1841 = vunpack.c.0.s8 %v1840
        %v1842 = vlaneseq
        %v1843 = vshrl.u32 %v1842, 7
        %v1844 = vsub.s32 %v1841, %v1843
        %v1845 = vrot.slane %v1837, %v1844
        %v1847 = vunpack.c.l.s4 1934713408
        %v1848 = vunpack.c.0.s8 %v1847
        %v1849 = vlaneseq
        %v1850 = vshrl.u32 %v1849, 7
        %v1851 = vsub.s32 %v1848, %v1850
        %v1852 = vrot.slane %v1838, %v1851
        %v1853 = vcombine.low %v1797, %v1813
        %v1854 = vcombine.high %v1797, %v1813
        %v1856 = vunpack.c.l.s4 1934713408
        %v1857 = vunpack.c.0.s8 %v1856
        %v1858 = vlaneseq
        %v1859 = vshrl.u32 %v1858, 7
        %v1860 = vsub.s32 %v1857, %v1859
        %v1861 = vrot.slane %v1853, %v1860
        %v1863 = vunpack.c.l.s4 1934713408
        %v1864 = vunpack.c.0.s8 %v1863
        %v1865 = vlaneseq
        %v1866 = vshrl.u32 %v1865, 7
        %v1867 = vsub.s32 %v1864, %v1866
        %v1868 = vrot.slane %v1854, %v1867
        %v1869 = vcombine.low %v1804, %v1820
        %v1870 = vcombine.high %v1804, %v1820
        %v1872 = vunpack.c.l.s4 1934713408
        %v1873 = vunpack.c.0.s8 %v1872
        %v1874 = vlaneseq
        %v1875 = vshrl.u32 %v1874, 7
        %v1876 = vsub.s32 %v1873, %v1875
        %v1877 = vrot.slane %v1869, %v1876
        %v1879 = vunpack.c.l.s4 1934713408
        %v1880 = vunpack.c.0.s8 %v1879
        %v1881 = vlaneseq
        %v1882 = vshrl.u32 %v1881, 7
        %v1883 = vsub.s32 %v1880, %v1882
        %v1884 = vrot.slane %v1870, %v1883
        %v1885 = vcombine.low %v1829, %v1861
        %v1886 = vcombine.high %v1829, %v1861
        %v1887 = vcombine.low %v1836, %v1868
        %v1888 = vcombine.high %v1836, %v1868
        %v1889 = vcombine.low %v1845, %v1877
        %v1890 = vcombine.high %v1845, %v1877
        %v1891 = vcombine.low %v1852, %v1884
        %v1892 = vcombine.high %v1852, %v1884
        %v1893 = vcombine.low %v175, %v309
        %v1894 = vcombine.high %v175, %v309
        %v1896 = vunpack.c.l.s4 1983009808
        %v1897 = vunpack.c.0.s8 %v1896
        %v1898 = vlaneseq
        %v1899 = vshrl.u32 %v1898, 7
        %v1900 = vsub.s32 %v1897, %v1899
        %v1901 = vrot.slane %v1893, %v1900
        %v1903 = vunpack.c.l.s4 1983009808
        %v1904 = vunpack.c.0.s8 %v1903
        %v1905 = vlaneseq
        %v1906 = vshrl.u32 %v1905, 7
        %v1907 = vsub.s32 %v1904, %v1906
        %v1908 = vrot.slane %v1894, %v1907
        %v1909 = vcombine.low %v242, %v376
        %v1910 = vcombine.high %v242, %v376
        %v1912 = vunpack.c.l.s4 1983009808
        %v1913 = vunpack.c.0.s8 %v1912
        %v1914 = vlaneseq
        %v1915 = vshrl.u32 %v1914, 7
        %v1916 = vsub.s32 %v1913, %v1915
        %v1917 = vrot.slane %v1909, %v1916
        %v1919 = vunpack.c.l.s4 1983009808
        %v1920 = vunpack.c.0.s8 %v1919
        %v1921 = vlaneseq
        %v1922 = vshrl.u32 %v1921, 7
        %v1923 = vsub.s32 %v1920, %v1922
        %v1924 = vrot.slane %v1910, %v1923
        %v1925 = vcombine.low %v443, %v577
        %v1926 = vcombine.high %v443, %v577
        %v1928 = vunpack.c.l.s4 1983009808
        %v1929 = vunpack.c.0.s8 %v1928
        %v1930 = vlaneseq
        %v1931 = vshrl.u32 %v1930, 7
        %v1932 = vsub.s32 %v1929, %v1931
        %v1933 = vrot.slane %v1925, %v1932
        %v1935 = vunpack.c.l.s4 1983009808
        %v1936 = vunpack.c.0.s8 %v1935
        %v1937 = vlaneseq
        %v1938 = vshrl.u32 %v1937, 7
        %v1939 = vsub.s32 %v1936, %v1938
        %v1940 = vrot.slane %v1926, %v1939
        %v1941 = vcombine.low %v510, %v644
        %v1942 = vcombine.high %v510, %v644
        %v1944 = vunpack.c.l.s4 1983009808
        %v1945 = vunpack.c.0.s8 %v1944
        %v1946 = vlaneseq
        %v1947 = vshrl.u32 %v1946, 7
        %v1948 = vsub.s32 %v1945, %v1947
        %v1949 = vrot.slane %v1941, %v1948
        %v1951 = vunpack.c.l.s4 1983009808
        %v1952 = vunpack.c.0.s8 %v1951
        %v1953 = vlaneseq
        %v1954 = vshrl.u32 %v1953, 7
        %v1955 = vsub.s32 %v1952, %v1954
        %v1956 = vrot.slane %v1942, %v1955
        %v1957 = vcombine.low %v1901, %v1917
        %v1958 = vcombine.high %v1901, %v1917
        %v1960 = vunpack.c.l.s4 1934713408
        %v1961 = vunpack.c.0.s8 %v1960
        %v1962 = vlaneseq
        %v1963 = vshrl.u32 %v1962, 7
        %v1964 = vsub.s32 %v1961, %v1963
        %v1965 = vrot.slane %v1957, %v1964
        %v1967 = vunpack.c.l.s4 1934713408
        %v1968 = vunpack.c.0.s8 %v1967
        %v1969 = vlaneseq
        %v1970 = vshrl.u32 %v1969, 7
        %v1971 = vsub.s32 %v1968, %v1970
        %v1972 = vrot.slane %v1958, %v1971
        %v1973 = vcombine.low %v1908, %v1924
        %v1974 = vcombine.high %v1908, %v1924
        %v1976 = vunpack.c.l.s4 1934713408
        %v1977 = vunpack.c.0.s8 %v1976
        %v1978 = vlaneseq
        %v1979 = vshrl.u32 %v1978, 7
        %v1980 = vsub.s32 %v1977, %v1979
        %v1981 = vrot.slane %v1973, %v1980
        %v1983 = vunpack.c.l.s4 1934713408
        %v1984 = vunpack.c.0.s8 %v1983
        %v1985 = vlaneseq
        %v1986 = vshrl.u32 %v1985, 7
        %v1987 = vsub.s32 %v1984, %v1986
        %v1988 = vrot.slane %v1974, %v1987
        %v1989 = vcombine.low %v1933, %v1949
        %v1990 = vcombine.high %v1933, %v1949
        %v1992 = vunpack.c.l.s4 1934713408
        %v1993 = vunpack.c.0.s8 %v1992
        %v1994 = vlaneseq
        %v1995 = vshrl.u32 %v1994, 7
        %v1996 = vsub.s32 %v1993, %v1995
        %v1997 = vrot.slane %v1989, %v1996
        %v1999 = vunpack.c.l.s4 1934713408
        %v2000 = vunpack.c.0.s8 %v1999
        %v2001 = vlaneseq
        %v2002 = vshrl.u32 %v2001, 7
        %v2003 = vsub.s32 %v2000, %v2002
        %v2004 = vrot.slane %v1990, %v2003
        %v2005 = vcombine.low %v1940, %v1956
        %v2006 = vcombine.high %v1940, %v1956
        %v2008 = vunpack.c.l.s4 1934713408
        %v2009 = vunpack.c.0.s8 %v2008
        %v2010 = vlaneseq
        %v2011 = vshrl.u32 %v2010, 7
        %v2012 = vsub.s32 %v2009, %v2011
        %v2013 = vrot.slane %v2005, %v2012
        %v2015 = vunpack.c.l.s4 1934713408
        %v2016 = vunpack.c.0.s8 %v2015
        %v2017 = vlaneseq
        %v2018 = vshrl.u32 %v2017, 7
        %v2019 = vsub.s32 %v2016, %v2018
        %v2020 = vrot.slane %v2006, %v2019
        %v2021 = vcombine.low %v1965, %v1997
        %v2022 = vcombine.high %v1965, %v1997
        %v2023 = vcombine.low %v1972, %v2004
        %v2024 = vcombine.high %v1972, %v2004
        %v2025 = vcombine.low %v1981, %v2013
        %v2026 = vcombine.high %v1981, %v2013
        %v2027 = vcombine.low %v1988, %v2020
        %v2028 = vcombine.high %v1988, %v2020
        %v2029 = vcombine.low %v179, %v313
        %v2030 = vcombine.high %v179, %v313
        %v2032 = vunpack.c.l.s4 1983009808
        %v2033 = vunpack.c.0.s8 %v2032
        %v2034 = vlaneseq
        %v2035 = vshrl.u32 %v2034, 7
        %v2036 = vsub.s32 %v2033, %v2035
        %v2037 = vrot.slane %v2029, %v2036
        %v2039 = vunpack.c.l.s4 1983009808
        %v2040 = vunpack.c.0.s8 %v2039
        %v2041 = vlaneseq
        %v2042 = vshrl.u32 %v2041, 7
        %v2043 = vsub.s32 %v2040, %v2042
        %v2044 = vrot.slane %v2030, %v2043
        %v2045 = vcombine.low %v246, %v380
        %v2046 = vcombine.high %v246, %v380
        %v2048 = vunpack.c.l.s4 1983009808
        %v2049 = vunpack.c.0.s8 %v2048
        %v2050 = vlaneseq
        %v2051 = vshrl.u32 %v2050, 7
        %v2052 = vsub.s32 %v2049, %v2051
        %v2053 = vrot.slane %v2045, %v2052
        %v2055 = vunpack.c.l.s4 1983009808
        %v2056 = vunpack.c.0.s8 %v2055
        %v2057 = vlaneseq
        %v2058 = vshrl.u32 %v2057, 7
        %v2059 = vsub.s32 %v2056, %v2058
        %v2060 = vrot.slane %v2046, %v2059
        %v2061 = vcombine.low %v447, %v581
        %v2062 = vcombine.high %v447, %v581
        %v2064 = vunpack.c.l.s4 1983009808
        %v2065 = vunpack.c.0.s8 %v2064
        %v2066 = vlaneseq
        %v2067 = vshrl.u32 %v2066, 7
        %v2068 = vsub.s32 %v2065, %v2067
        %v2069 = vrot.slane %v2061, %v2068
        %v2071 = vunpack.c.l.s4 1983009808
        %v2072 = vunpack.c.0.s8 %v2071
        %v2073 = vlaneseq
        %v2074 = vshrl.u32 %v2073, 7
        %v2075 = vsub.s32 %v2072, %v2074
        %v2076 = vrot.slane %v2062, %v2075
        %v2077 = vcombine.low %v514, %v648
        %v2078 = vcombine.high %v514, %v648
        %v2080 = vunpack.c.l.s4 1983009808
        %v2081 = vunpack.c.0.s8 %v2080
        %v2082 = vlaneseq
        %v2083 = vshrl.u32 %v2082, 7
        %v2084 = vsub.s32 %v2081, %v2083
        %v2085 = vrot.slane %v2077, %v2084
        %v2087 = vunpack.c.l.s4 1983009808
        %v2088 = vunpack.c.0.s8 %v2087
        %v2089 = vlaneseq
        %v2090 = vshrl.u32 %v2089, 7
        %v2091 = vsub.s32 %v2088, %v2090
        %v2092 = vrot.slane %v2078, %v2091
        %v2093 = vcombine.low %v2037, %v2053
        %v2094 = vcombine.high %v2037, %v2053
        %v2096 = vunpack.c.l.s4 1934713408
        %v2097 = vunpack.c.0.s8 %v2096
        %v2098 = vlaneseq
        %v2099 = vshrl.u32 %v2098, 7
        %v2100 = vsub.s32 %v2097, %v2099
        %v2101 = vrot.slane %v2093, %v2100
        %v2103 = vunpack.c.l.s4 1934713408
        %v2104 = vunpack.c.0.s8 %v2103
        %v2105 = vlaneseq
        %v2106 = vshrl.u32 %v2105, 7
        %v2107 = vsub.s32 %v2104, %v2106
        %v2108 = vrot.slane %v2094, %v2107
        %v2109 = vcombine.low %v2044, %v2060
        %v2110 = vcombine.high %v2044, %v2060
        %v2112 = vunpack.c.l.s4 1934713408
        %v2113 = vunpack.c.0.s8 %v2112
        %v2114 = vlaneseq
        %v2115 = vshrl.u32 %v2114, 7
        %v2116 = vsub.s32 %v2113, %v2115
        %v2117 = vrot.slane %v2109, %v2116
        %v2119 = vunpack.c.l.s4 1934713408
        %v2120 = vunpack.c.0.s8 %v2119
        %v2121 = vlaneseq
        %v2122 = vshrl.u32 %v2121, 7
        %v2123 = vsub.s32 %v2120, %v2122
        %v2124 = vrot.slane %v2110, %v2123
        %v2125 = vcombine.low %v2069, %v2085
        %v2126 = vcombine.high %v2069, %v2085
        %v2128 = vunpack.c.l.s4 1934713408
        %v2129 = vunpack.c.0.s8 %v2128
        %v2130 = vlaneseq
        %v2131 = vshrl.u32 %v2130, 7
        %v2132 = vsub.s32 %v2129, %v2131
        %v2133 = vrot.slane %v2125, %v2132
        %v2135 = vunpack.c.l.s4 1934713408
        %v2136 = vunpack.c.0.s8 %v2135
        %v2137 = vlaneseq
        %v2138 = vshrl.u32 %v2137, 7
        %v2139 = vsub.s32 %v2136, %v2138
        %v2140 = vrot.slane %v2126, %v2139
        %v2141 = vcombine.low %v2076, %v2092
        %v2142 = vcombine.high %v2076, %v2092
        %v2144 = vunpack.c.l.s4 1934713408
        %v2145 = vunpack.c.0.s8 %v2144
        %v2146 = vlaneseq
        %v2147 = vshrl.u32 %v2146, 7
        %v2148 = vsub.s32 %v2145, %v2147
        %v2149 = vrot.slane %v2141, %v2148
        %v2151 = vunpack.c.l.s4 1934713408
        %v2152 = vunpack.c.0.s8 %v2151
        %v2153 = vlaneseq
        %v2154 = vshrl.u32 %v2153, 7
        %v2155 = vsub.s32 %v2152, %v2154
        %v2156 = vrot.slane %v2142, %v2155
        %v2157 = vcombine.low %v2101, %v2133
        %v2158 = vcombine.high %v2101, %v2133
        %v2159 = vcombine.low %v2108, %v2140
        %v2160 = vcombine.high %v2108, %v2140
        %v2161 = vcombine.low %v2117, %v2149
        %v2162 = vcombine.high %v2117, %v2149
        %v2163 = vcombine.low %v2124, %v2156
        %v2164 = vcombine.high %v2124, %v2156
        %v2165 = vcombine.low %v183, %v317
        %v2166 = vcombine.high %v183, %v317
        %v2168 = vunpack.c.l.s4 1983009808
        %v2169 = vunpack.c.0.s8 %v2168
        %v2170 = vlaneseq
        %v2171 = vshrl.u32 %v2170, 7
        %v2172 = vsub.s32 %v2169, %v2171
        %v2173 = vrot.slane %v2165, %v2172
        %v2175 = vunpack.c.l.s4 1983009808
        %v2176 = vunpack.c.0.s8 %v2175
        %v2177 = vlaneseq
        %v2178 = vshrl.u32 %v2177, 7
        %v2179 = vsub.s32 %v2176, %v2178
        %v2180 = vrot.slane %v2166, %v2179
        %v2181 = vcombine.low %v250, %v384
        %v2182 = vcombine.high %v250, %v384
        %v2184 = vunpack.c.l.s4 1983009808
        %v2185 = vunpack.c.0.s8 %v2184
        %v2186 = vlaneseq
        %v2187 = vshrl.u32 %v2186, 7
        %v2188 = vsub.s32 %v2185, %v2187
        %v2189 = vrot.slane %v2181, %v2188
        %v2191 = vunpack.c.l.s4 1983009808
        %v2192 = vunpack.c.0.s8 %v2191
        %v2193 = vlaneseq
        %v2194 = vshrl.u32 %v2193, 7
        %v2195 = vsub.s32 %v2192, %v2194
        %v2196 = vrot.slane %v2182, %v2195
        %v2197 = vcombine.low %v451, %v585
        %v2198 = vcombine.high %v451, %v585
        %v2200 = vunpack.c.l.s4 1983009808
        %v2201 = vunpack.c.0.s8 %v2200
        %v2202 = vlaneseq
        %v2203 = vshrl.u32 %v2202, 7
        %v2204 = vsub.s32 %v2201, %v2203
        %v2205 = vrot.slane %v2197, %v2204
        %v2207 = vunpack.c.l.s4 1983009808
        %v2208 = vunpack.c.0.s8 %v2207
        %v2209 = vlaneseq
        %v2210 = vshrl.u32 %v2209, 7
        %v2211 = vsub.s32 %v2208, %v2210
        %v2212 = vrot.slane %v2198, %v2211
        %v2213 = vcombine.low %v518, %v652
        %v2214 = vcombine.high %v518, %v652
        %v2216 = vunpack.c.l.s4 1983009808
        %v2217 = vunpack.c.0.s8 %v2216
        %v2218 = vlaneseq
        %v2219 = vshrl.u32 %v2218, 7
        %v2220 = vsub.s32 %v2217, %v2219
        %v2221 = vrot.slane %v2213, %v2220
        %v2223 = vunpack.c.l.s4 1983009808
        %v2224 = vunpack.c.0.s8 %v2223
        %v2225 = vlaneseq
        %v2226 = vshrl.u32 %v2225, 7
        %v2227 = vsub.s32 %v2224, %v2226
        %v2228 = vrot.slane %v2214, %v2227
        %v2229 = vcombine.low %v2173, %v2189
        %v2230 = vcombine.high %v2173, %v2189
        %v2232 = vunpack.c.l.s4 1934713408
        %v2233 = vunpack.c.0.s8 %v2232
        %v2234 = vlaneseq
        %v2235 = vshrl.u32 %v2234, 7
        %v2236 = vsub.s32 %v2233, %v2235
        %v2237 = vrot.slane %v2229, %v2236
        %v2239 = vunpack.c.l.s4 1934713408
        %v2240 = vunpack.c.0.s8 %v2239
        %v2241 = vlaneseq
        %v2242 = vshrl.u32 %v2241, 7
        %v2243 = vsub.s32 %v2240, %v2242
        %v2244 = vrot.slane %v2230, %v2243
        %v2245 = vcombine.low %v2180, %v2196
        %v2246 = vcombine.high %v2180, %v2196
        %v2248 = vunpack.c.l.s4 1934713408
        %v2249 = vunpack.c.0.s8 %v2248
        %v2250 = vlaneseq
        %v2251 = vshrl.u32 %v2250, 7
        %v2252 = vsub.s32 %v2249, %v2251
        %v2253 = vrot.slane %v2245, %v2252
        %v2255 = vunpack.c.l.s4 1934713408
        %v2256 = vunpack.c.0.s8 %v2255
        %v2257 = vlaneseq
        %v2258 = vshrl.u32 %v2257, 7
        %v2259 = vsub.s32 %v2256, %v2258
        %v2260 = vrot.slane %v2246, %v2259
        %v2261 = vcombine.low %v2205, %v2221
        %v2262 = vcombine.high %v2205, %v2221
        %v2264 = vunpack.c.l.s4 1934713408
        %v2265 = vunpack.c.0.s8 %v2264
        %v2266 = vlaneseq
        %v2267 = vshrl.u32 %v2266, 7
        %v2268 = vsub.s32 %v2265, %v2267
        %v2269 = vrot.slane %v2261, %v2268
        %v2271 = vunpack.c.l.s4 1934713408
        %v2272 = vunpack.c.0.s8 %v2271
        %v2273 = vlaneseq
        %v2274 = vshrl.u32 %v2273, 7
        %v2275 = vsub.s32 %v2272, %v2274
        %v2276 = vrot.slane %v2262, %v2275
        %v2277 = vcombine.low %v2212, %v2228
        %v2278 = vcombine.high %v2212, %v2228
        %v2280 = vunpack.c.l.s4 1934713408
        %v2281 = vunpack.c.0.s8 %v2280
        %v2282 = vlaneseq
        %v2283 = vshrl.u32 %v2282, 7
        %v2284 = vsub.s32 %v2281, %v2283
        %v2285 = vrot.slane %v2277, %v2284
        %v2287 = vunpack.c.l.s4 1934713408
        %v2288 = vunpack.c.0.s8 %v2287
        %v2289 = vlaneseq
        %v2290 = vshrl.u32 %v2289, 7
        %v2291 = vsub.s32 %v2288, %v2290
        %v2292 = vrot.slane %v2278, %v2291
        %v2293 = vcombine.low %v2237, %v2269
        %v2294 = vcombine.high %v2237, %v2269
        %v2295 = vcombine.low %v2244, %v2276
        %v2296 = vcombine.high %v2244, %v2276
        %v2297 = vcombine.low %v2253, %v2285
        %v2298 = vcombine.high %v2253, %v2285
        %v2299 = vcombine.low %v2260, %v2292
        %v2300 = vcombine.high %v2260, %v2292
        %v2301 = vcombine.low %v187, %v321
        %v2302 = vcombine.high %v187, %v321
        %v2304 = vunpack.c.l.s4 1983009808
        %v2305 = vunpack.c.0.s8 %v2304
        %v2306 = vlaneseq
        %v2307 = vshrl.u32 %v2306, 7
        %v2308 = vsub.s32 %v2305, %v2307
        %v2309 = vrot.slane %v2301, %v2308
        %v2311 = vunpack.c.l.s4 1983009808
        %v2312 = vunpack.c.0.s8 %v2311
        %v2313 = vlaneseq
        %v2314 = vshrl.u32 %v2313, 7
        %v2315 = vsub.s32 %v2312, %v2314
        %v2316 = vrot.slane %v2302, %v2315
        %v2317 = vcombine.low %v254, %v388
        %v2318 = vcombine.high %v254, %v388
        %v2320 = vunpack.c.l.s4 1983009808
        %v2321 = vunpack.c.0.s8 %v2320
        %v2322 = vlaneseq
        %v2323 = vshrl.u32 %v2322, 7
        %v2324 = vsub.s32 %v2321, %v2323
        %v2325 = vrot.slane %v2317, %v2324
        %v2327 = vunpack.c.l.s4 1983009808
        %v2328 = vunpack.c.0.s8 %v2327
        %v2329 = vlaneseq
        %v2330 = vshrl.u32 %v2329, 7
        %v2331 = vsub.s32 %v2328, %v2330
        %v2332 = vrot.slane %v2318, %v2331
        %v2333 = vcombine.low %v455, %v589
        %v2334 = vcombine.high %v455, %v589
        %v2336 = vunpack.c.l.s4 1983009808
        %v2337 = vunpack.c.0.s8 %v2336
        %v2338 = vlaneseq
        %v2339 = vshrl.u32 %v2338, 7
        %v2340 = vsub.s32 %v2337, %v2339
        %v2341 = vrot.slane %v2333, %v2340
        %v2343 = vunpack.c.l.s4 1983009808
        %v2344 = vunpack.c.0.s8 %v2343
        %v2345 = vlaneseq
        %v2346 = vshrl.u32 %v2345, 7
        %v2347 = vsub.s32 %v2344, %v2346
        %v2348 = vrot.slane %v2334, %v2347
        %v2349 = vcombine.low %v522, %v656
        %v2350 = vcombine.high %v522, %v656
        %v2352 = vunpack.c.l.s4 1983009808
        %v2353 = vunpack.c.0.s8 %v2352
        %v2354 = vlaneseq
        %v2355 = vshrl.u32 %v2354, 7
        %v2356 = vsub.s32 %v2353, %v2355
        %v2357 = vrot.slane %v2349, %v2356
        %v2359 = vunpack.c.l.s4 1983009808
        %v2360 = vunpack.c.0.s8 %v2359
        %v2361 = vlaneseq
        %v2362 = vshrl.u32 %v2361, 7
        %v2363 = vsub.s32 %v2360, %v2362
        %v2364 = vrot.slane %v2350, %v2363
        %v2365 = vcombine.low %v2309, %v2325
        %v2366 = vcombine.high %v2309, %v2325
        %v2368 = vunpack.c.l.s4 1934713408
        %v2369 = vunpack.c.0.s8 %v2368
        %v2370 = vlaneseq
        %v2371 = vshrl.u32 %v2370, 7
        %v2372 = vsub.s32 %v2369, %v2371
        %v2373 = vrot.slane %v2365, %v2372
        %v2375 = vunpack.c.l.s4 1934713408
        %v2376 = vunpack.c.0.s8 %v2375
        %v2377 = vlaneseq
        %v2378 = vshrl.u32 %v2377, 7
        %v2379 = vsub.s32 %v2376, %v2378
        %v2380 = vrot.slane %v2366, %v2379
        %v2381 = vcombine.low %v2316, %v2332
        %v2382 = vcombine.high %v2316, %v2332
        %v2384 = vunpack.c.l.s4 1934713408
        %v2385 = vunpack.c.0.s8 %v2384
        %v2386 = vlaneseq
        %v2387 = vshrl.u32 %v2386, 7
        %v2388 = vsub.s32 %v2385, %v2387
        %v2389 = vrot.slane %v2381, %v2388
        %v2391 = vunpack.c.l.s4 1934713408
        %v2392 = vunpack.c.0.s8 %v2391
        %v2393 = vlaneseq
        %v2394 = vshrl.u32 %v2393, 7
        %v2395 = vsub.s32 %v2392, %v2394
        %v2396 = vrot.slane %v2382, %v2395
        %v2397 = vcombine.low %v2341, %v2357
        %v2398 = vcombine.high %v2341, %v2357
        %v2400 = vunpack.c.l.s4 1934713408
        %v2401 = vunpack.c.0.s8 %v2400
        %v2402 = vlaneseq
        %v2403 = vshrl.u32 %v2402, 7
        %v2404 = vsub.s32 %v2401, %v2403
        %v2405 = vrot.slane %v2397, %v2404
        %v2407 = vunpack.c.l.s4 1934713408
        %v2408 = vunpack.c.0.s8 %v2407
        %v2409 = vlaneseq
        %v2410 = vshrl.u32 %v2409, 7
        %v2411 = vsub.s32 %v2408, %v2410
        %v2412 = vrot.slane %v2398, %v2411
        %v2413 = vcombine.low %v2348, %v2364
        %v2414 = vcombine.high %v2348, %v2364
        %v2416 = vunpack.c.l.s4 1934713408
        %v2417 = vunpack.c.0.s8 %v2416
        %v2418 = vlaneseq
        %v2419 = vshrl.u32 %v2418, 7
        %v2420 = vsub.s32 %v2417, %v2419
        %v2421 = vrot.slane %v2413, %v2420
        %v2423 = vunpack.c.l.s4 1934713408
        %v2424 = vunpack.c.0.s8 %v2423
        %v2425 = vlaneseq
        %v2426 = vshrl.u32 %v2425, 7
        %v2427 = vsub.s32 %v2424, %v2426
        %v2428 = vrot.slane %v2414, %v2427
        %v2429 = vcombine.low %v2373, %v2405
        %v2430 = vcombine.high %v2373, %v2405
        %v2431 = vcombine.low %v2380, %v2412
        %v2432 = vcombine.high %v2380, %v2412
        %v2433 = vcombine.low %v2389, %v2421
        %v2434 = vcombine.high %v2389, %v2421
        %v2435 = vcombine.low %v2396, %v2428
        %v2436 = vcombine.high %v2396, %v2428
        %v2437 = vcombine.low %v191, %v325
        %v2438 = vcombine.high %v191, %v325
        %v2440 = vunpack.c.l.s4 1983009808
        %v2441 = vunpack.c.0.s8 %v2440
        %v2442 = vlaneseq
        %v2443 = vshrl.u32 %v2442, 7
        %v2444 = vsub.s32 %v2441, %v2443
        %v2445 = vrot.slane %v2437, %v2444
        %v2447 = vunpack.c.l.s4 1983009808
        %v2448 = vunpack.c.0.s8 %v2447
        %v2449 = vlaneseq
        %v2450 = vshrl.u32 %v2449, 7
        %v2451 = vsub.s32 %v2448, %v2450
        %v2452 = vrot.slane %v2438, %v2451
        %v2453 = vcombine.low %v258, %v392
        %v2454 = vcombine.high %v258, %v392
        %v2456 = vunpack.c.l.s4 1983009808
        %v2457 = vunpack.c.0.s8 %v2456
        %v2458 = vlaneseq
        %v2459 = vshrl.u32 %v2458, 7
        %v2460 = vsub.s32 %v2457, %v2459
        %v2461 = vrot.slane %v2453, %v2460
        %v2463 = vunpack.c.l.s4 1983009808
        %v2464 = vunpack.c.0.s8 %v2463
        %v2465 = vlaneseq
        %v2466 = vshrl.u32 %v2465, 7
        %v2467 = vsub.s32 %v2464, %v2466
        %v2468 = vrot.slane %v2454, %v2467
        %v2469 = vcombine.low %v459, %v593
        %v2470 = vcombine.high %v459, %v593
        %v2472 = vunpack.c.l.s4 1983009808
        %v2473 = vunpack.c.0.s8 %v2472
        %v2474 = vlaneseq
        %v2475 = vshrl.u32 %v2474, 7
        %v2476 = vsub.s32 %v2473, %v2475
        %v2477 = vrot.slane %v2469, %v2476
        %v2479 = vunpack.c.l.s4 1983009808
        %v2480 = vunpack.c.0.s8 %v2479
        %v2481 = vlaneseq
        %v2482 = vshrl.u32 %v2481, 7
        %v2483 = vsub.s32 %v2480, %v2482
        %v2484 = vrot.slane %v2470, %v2483
        %v2485 = vcombine.low %v526, %v660
        %v2486 = vcombine.high %v526, %v660
        %v2488 = vunpack.c.l.s4 1983009808
        %v2489 = vunpack.c.0.s8 %v2488
        %v2490 = vlaneseq
        %v2491 = vshrl.u32 %v2490, 7
        %v2492 = vsub.s32 %v2489, %v2491
        %v2493 = vrot.slane %v2485, %v2492
        %v2495 = vunpack.c.l.s4 1983009808
        %v2496 = vunpack.c.0.s8 %v2495
        %v2497 = vlaneseq
        %v2498 = vshrl.u32 %v2497, 7
        %v2499 = vsub.s32 %v2496, %v2498
        %v2500 = vrot.slane %v2486, %v2499
        %v2501 = vcombine.low %v2445, %v2461
        %v2502 = vcombine.high %v2445, %v2461
        %v2504 = vunpack.c.l.s4 1934713408
        %v2505 = vunpack.c.0.s8 %v2504
        %v2506 = vlaneseq
        %v2507 = vshrl.u32 %v2506, 7
        %v2508 = vsub.s32 %v2505, %v2507
        %v2509 = vrot.slane %v2501, %v2508
        %v2511 = vunpack.c.l.s4 1934713408
        %v2512 = vunpack.c.0.s8 %v2511
        %v2513 = vlaneseq
        %v2514 = vshrl.u32 %v2513, 7
        %v2515 = vsub.s32 %v2512, %v2514
        %v2516 = vrot.slane %v2502, %v2515
        %v2517 = vcombine.low %v2452, %v2468
        %v2518 = vcombine.high %v2452, %v2468
        %v2520 = vunpack.c.l.s4 1934713408
        %v2521 = vunpack.c.0.s8 %v2520
        %v2522 = vlaneseq
        %v2523 = vshrl.u32 %v2522, 7
        %v2524 = vsub.s32 %v2521, %v2523
        %v2525 = vrot.slane %v2517, %v2524
        %v2527 = vunpack.c.l.s4 1934713408
        %v2528 = vunpack.c.0.s8 %v2527
        %v2529 = vlaneseq
        %v2530 = vshrl.u32 %v2529, 7
        %v2531 = vsub.s32 %v2528, %v2530
        %v2532 = vrot.slane %v2518, %v2531
        %v2533 = vcombine.low %v2477, %v2493
        %v2534 = vcombine.high %v2477, %v2493
        %v2536 = vunpack.c.l.s4 1934713408
        %v2537 = vunpack.c.0.s8 %v2536
        %v2538 = vlaneseq
        %v2539 = vshrl.u32 %v2538, 7
        %v2540 = vsub.s32 %v2537, %v2539
        %v2541 = vrot.slane %v2533, %v2540
        %v2543 = vunpack.c.l.s4 1934713408
        %v2544 = vunpack.c.0.s8 %v2543
        %v2545 = vlaneseq
        %v2546 = vshrl.u32 %v2545, 7
        %v2547 = vsub.s32 %v2544, %v2546
        %v2548 = vrot.slane %v2534, %v2547
        %v2549 = vcombine.low %v2484, %v2500
        %v2550 = vcombine.high %v2484, %v2500
        %v2552 = vunpack.c.l.s4 1934713408
        %v2553 = vunpack.c.0.s8 %v2552
        %v2554 = vlaneseq
        %v2555 = vshrl.u32 %v2554, 7
        %v2556 = vsub.s32 %v2553, %v2555
        %v2557 = vrot.slane %v2549, %v2556
        %v2559 = vunpack.c.l.s4 1934713408
        %v2560 = vunpack.c.0.s8 %v2559
        %v2561 = vlaneseq
        %v2562 = vshrl.u32 %v2561, 7
        %v2563 = vsub.s32 %v2560, %v2562
        %v2564 = vrot.slane %v2550, %v2563
        %v2565 = vcombine.low %v2509, %v2541
        %v2566 = vcombine.high %v2509, %v2541
        %v2567 = vcombine.low %v2516, %v2548
        %v2568 = vcombine.high %v2516, %v2548
        %v2569 = vcombine.low %v2525, %v2557
        %v2570 = vcombine.high %v2525, %v2557
        %v2571 = vcombine.low %v2532, %v2564
        %v2572 = vcombine.high %v2532, %v2564
        %v2573 = vcombine.low %v195, %v329
        %v2574 = vcombine.high %v195, %v329
        %v2576 = vunpack.c.l.s4 1983009808
        %v2577 = vunpack.c.0.s8 %v2576
        %v2578 = vlaneseq
        %v2579 = vshrl.u32 %v2578, 7
        %v2580 = vsub.s32 %v2577, %v2579
        %v2581 = vrot.slane %v2573, %v2580
        %v2583 = vunpack.c.l.s4 1983009808
        %v2584 = vunpack.c.0.s8 %v2583
        %v2585 = vlaneseq
        %v2586 = vshrl.u32 %v2585, 7
        %v2587 = vsub.s32 %v2584, %v2586
        %v2588 = vrot.slane %v2574, %v2587
        %v2589 = vcombine.low %v262, %v396
        %v2590 = vcombine.high %v262, %v396
        %v2592 = vunpack.c.l.s4 1983009808
        %v2593 = vunpack.c.0.s8 %v2592
        %v2594 = vlaneseq
        %v2595 = vshrl.u32 %v2594, 7
        %v2596 = vsub.s32 %v2593, %v2595
        %v2597 = vrot.slane %v2589, %v2596
        %v2599 = vunpack.c.l.s4 1983009808
        %v2600 = vunpack.c.0.s8 %v2599
        %v2601 = vlaneseq
        %v2602 = vshrl.u32 %v2601, 7
        %v2603 = vsub.s32 %v2600, %v2602
        %v2604 = vrot.slane %v2590, %v2603
        %v2605 = vcombine.low %v463, %v597
        %v2606 = vcombine.high %v463, %v597
        %v2608 = vunpack.c.l.s4 1983009808
        %v2609 = vunpack.c.0.s8 %v2608
        %v2610 = vlaneseq
        %v2611 = vshrl.u32 %v2610, 7
        %v2612 = vsub.s32 %v2609, %v2611
        %v2613 = vrot.slane %v2605, %v2612
        %v2615 = vunpack.c.l.s4 1983009808
        %v2616 = vunpack.c.0.s8 %v2615
        %v2617 = vlaneseq
        %v2618 = vshrl.u32 %v2617, 7
        %v2619 = vsub.s32 %v2616, %v2618
        %v2620 = vrot.slane %v2606, %v2619
        %v2621 = vcombine.low %v530, %v664
        %v2622 = vcombine.high %v530, %v664
        %v2624 = vunpack.c.l.s4 1983009808
        %v2625 = vunpack.c.0.s8 %v2624
        %v2626 = vlaneseq
        %v2627 = vshrl.u32 %v2626, 7
        %v2628 = vsub.s32 %v2625, %v2627
        %v2629 = vrot.slane %v2621, %v2628
        %v2631 = vunpack.c.l.s4 1983009808
        %v2632 = vunpack.c.0.s8 %v2631
        %v2633 = vlaneseq
        %v2634 = vshrl.u32 %v2633, 7
        %v2635 = vsub.s32 %v2632, %v2634
        %v2636 = vrot.slane %v2622, %v2635
        %v2637 = vcombine.low %v2581, %v2597
        %v2638 = vcombine.high %v2581, %v2597
        %v2640 = vunpack.c.l.s4 1934713408
        %v2641 = vunpack.c.0.s8 %v2640
        %v2642 = vlaneseq
        %v2643 = vshrl.u32 %v2642, 7
        %v2644 = vsub.s32 %v2641, %v2643
        %v2645 = vrot.slane %v2637, %v2644
        %v2647 = vunpack.c.l.s4 1934713408
        %v2648 = vunpack.c.0.s8 %v2647
        %v2649 = vlaneseq
        %v2650 = vshrl.u32 %v2649, 7
        %v2651 = vsub.s32 %v2648, %v2650
        %v2652 = vrot.slane %v2638, %v2651
        %v2653 = vcombine.low %v2588, %v2604
        %v2654 = vcombine.high %v2588, %v2604
        %v2656 = vunpack.c.l.s4 1934713408
        %v2657 = vunpack.c.0.s8 %v2656
        %v2658 = vlaneseq
        %v2659 = vshrl.u32 %v2658, 7
        %v2660 = vsub.s32 %v2657, %v2659
        %v2661 = vrot.slane %v2653, %v2660
        %v2663 = vunpack.c.l.s4 1934713408
        %v2664 = vunpack.c.0.s8 %v2663
        %v2665 = vlaneseq
        %v2666 = vshrl.u32 %v2665, 7
        %v2667 = vsub.s32 %v2664, %v2666
        %v2668 = vrot.slane %v2654, %v2667
        %v2669 = vcombine.low %v2613, %v2629
        %v2670 = vcombine.high %v2613, %v2629
        %v2672 = vunpack.c.l.s4 1934713408
        %v2673 = vunpack.c.0.s8 %v2672
        %v2674 = vlaneseq
        %v2675 = vshrl.u32 %v2674, 7
        %v2676 = vsub.s32 %v2673, %v2675
        %v2677 = vrot.slane %v2669, %v2676
        %v2679 = vunpack.c.l.s4 1934713408
        %v2680 = vunpack.c.0.s8 %v2679
        %v2681 = vlaneseq
        %v2682 = vshrl.u32 %v2681, 7
        %v2683 = vsub.s32 %v2680, %v2682
        %v2684 = vrot.slane %v2670, %v2683
        %v2685 = vcombine.low %v2620, %v2636
        %v2686 = vcombine.high %v2620, %v2636
        %v2688 = vunpack.c.l.s4 1934713408
        %v2689 = vunpack.c.0.s8 %v2688
        %v2690 = vlaneseq
        %v2691 = vshrl.u32 %v2690, 7
        %v2692 = vsub.s32 %v2689, %v2691
        %v2693 = vrot.slane %v2685, %v2692
        %v2695 = vunpack.c.l.s4 1934713408
        %v2696 = vunpack.c.0.s8 %v2695
        %v2697 = vlaneseq
        %v2698 = vshrl.u32 %v2697, 7
        %v2699 = vsub.s32 %v2696, %v2698
        %v2700 = vrot.slane %v2686, %v2699
        %v2701 = vcombine.low %v2645, %v2677
        %v2702 = vcombine.high %v2645, %v2677
        %v2703 = vcombine.low %v2652, %v2684
        %v2704 = vcombine.high %v2652, %v2684
        %v2705 = vcombine.low %v2661, %v2693
        %v2706 = vcombine.high %v2661, %v2693
        %v2707 = vcombine.low %v2668, %v2700
        %v2708 = vcombine.high %v2668, %v2700
        %v2709 = vcombine.low %v199, %v333
        %v2710 = vcombine.high %v199, %v333
        %v2712 = vunpack.c.l.s4 1983009808
        %v2713 = vunpack.c.0.s8 %v2712
        %v2714 = vlaneseq
        %v2715 = vshrl.u32 %v2714, 7
        %v2716 = vsub.s32 %v2713, %v2715
        %v2717 = vrot.slane %v2709, %v2716
        %v2719 = vunpack.c.l.s4 1983009808
        %v2720 = vunpack.c.0.s8 %v2719
        %v2721 = vlaneseq
        %v2722 = vshrl.u32 %v2721, 7
        %v2723 = vsub.s32 %v2720, %v2722
        %v2724 = vrot.slane %v2710, %v2723
        %v2725 = vcombine.low %v266, %v400
        %v2726 = vcombine.high %v266, %v400
        %v2728 = vunpack.c.l.s4 1983009808
        %v2729 = vunpack.c.0.s8 %v2728
        %v2730 = vlaneseq
        %v2731 = vshrl.u32 %v2730, 7
        %v2732 = vsub.s32 %v2729, %v2731
        %v2733 = vrot.slane %v2725, %v2732
        %v2735 = vunpack.c.l.s4 1983009808
        %v2736 = vunpack.c.0.s8 %v2735
        %v2737 = vlaneseq
        %v2738 = vshrl.u32 %v2737, 7
        %v2739 = vsub.s32 %v2736, %v2738
        %v2740 = vrot.slane %v2726, %v2739
        %v2741 = vcombine.low %v467, %v601
        %v2742 = vcombine.high %v467, %v601
        %v2744 = vunpack.c.l.s4 1983009808
        %v2745 = vunpack.c.0.s8 %v2744
        %v2746 = vlaneseq
        %v2747 = vshrl.u32 %v2746, 7
        %v2748 = vsub.s32 %v2745, %v2747
        %v2749 = vrot.slane %v2741, %v2748
        %v2751 = vunpack.c.l.s4 1983009808
        %v2752 = vunpack.c.0.s8 %v2751
        %v2753 = vlaneseq
        %v2754 = vshrl.u32 %v2753, 7
        %v2755 = vsub.s32 %v2752, %v2754
        %v2756 = vrot.slane %v2742, %v2755
        %v2757 = vcombine.low %v534, %v668
        %v2758 = vcombine.high %v534, %v668
        %v2760 = vunpack.c.l.s4 1983009808
        %v2761 = vunpack.c.0.s8 %v2760
        %v2762 = vlaneseq
        %v2763 = vshrl.u32 %v2762, 7
        %v2764 = vsub.s32 %v2761, %v2763
        %v2765 = vrot.slane %v2757, %v2764
        %v2767 = vunpack.c.l.s4 1983009808
        %v2768 = vunpack.c.0.s8 %v2767
        %v2769 = vlaneseq
        %v2770 = vshrl.u32 %v2769, 7
        %v2771 = vsub.s32 %v2768, %v2770
        %v2772 = vrot.slane %v2758, %v2771
        %v2773 = vcombine.low %v2717, %v2733
        %v2774 = vcombine.high %v2717, %v2733
        %v2776 = vunpack.c.l.s4 1934713408
        %v2777 = vunpack.c.0.s8 %v2776
        %v2778 = vlaneseq
        %v2779 = vshrl.u32 %v2778, 7
        %v2780 = vsub.s32 %v2777, %v2779
        %v2781 = vrot.slane %v2773, %v2780
        %v2783 = vunpack.c.l.s4 1934713408
        %v2784 = vunpack.c.0.s8 %v2783
        %v2785 = vlaneseq
        %v2786 = vshrl.u32 %v2785, 7
        %v2787 = vsub.s32 %v2784, %v2786
        %v2788 = vrot.slane %v2774, %v2787
        %v2789 = vcombine.low %v2724, %v2740
        %v2790 = vcombine.high %v2724, %v2740
        %v2792 = vunpack.c.l.s4 1934713408
        %v2793 = vunpack.c.0.s8 %v2792
        %v2794 = vlaneseq
        %v2795 = vshrl.u32 %v2794, 7
        %v2796 = vsub.s32 %v2793, %v2795
        %v2797 = vrot.slane %v2789, %v2796
        %v2799 = vunpack.c.l.s4 1934713408
        %v2800 = vunpack.c.0.s8 %v2799
        %v2801 = vlaneseq
        %v2802 = vshrl.u32 %v2801, 7
        %v2803 = vsub.s32 %v2800, %v2802
        %v2804 = vrot.slane %v2790, %v2803
        %v2805 = vcombine.low %v2749, %v2765
        %v2806 = vcombine.high %v2749, %v2765
        %v2808 = vunpack.c.l.s4 1934713408
        %v2809 = vunpack.c.0.s8 %v2808
        %v2810 = vlaneseq
        %v2811 = vshrl.u32 %v2810, 7
        %v2812 = vsub.s32 %v2809, %v2811
        %v2813 = vrot.slane %v2805, %v2812
        %v2815 = vunpack.c.l.s4 1934713408
        %v2816 = vunpack.c.0.s8 %v2815
        %v2817 = vlaneseq
        %v2818 = vshrl.u32 %v2817, 7
        %v2819 = vsub.s32 %v2816, %v2818
        %v2820 = vrot.slane %v2806, %v2819
        %v2821 = vcombine.low %v2756, %v2772
        %v2822 = vcombine.high %v2756, %v2772
        %v2824 = vunpack.c.l.s4 1934713408
        %v2825 = vunpack.c.0.s8 %v2824
        %v2826 = vlaneseq
        %v2827 = vshrl.u32 %v2826, 7
        %v2828 = vsub.s32 %v2825, %v2827
        %v2829 = vrot.slane %v2821, %v2828
        %v2831 = vunpack.c.l.s4 1934713408
        %v2832 = vunpack.c.0.s8 %v2831
        %v2833 = vlaneseq
        %v2834 = vshrl.u32 %v2833, 7
        %v2835 = vsub.s32 %v2832, %v2834
        %v2836 = vrot.slane %v2822, %v2835
        %v2837 = vcombine.low %v2781, %v2813
        %v2838 = vcombine.high %v2781, %v2813
        %v2839 = vcombine.low %v2788, %v2820
        %v2840 = vcombine.high %v2788, %v2820
        %v2841 = vcombine.low %v2797, %v2829
        %v2842 = vcombine.high %v2797, %v2829
        %v2843 = vcombine.low %v2804, %v2836
        %v2844 = vcombine.high %v2804, %v2836
        %2846 = vrot.lane.b32.xlu0 %v798, 2
        %v2847 = vpop.permute.xlu0 %2846
        %2850 = vrot.lane.b32.xlu0 %v799, 4
        %v2851 = vpop.permute.xlu0 %2850
        %2854 = vrot.lane.b32.xlu0 %v800, 6
        %v2855 = vpop.permute.xlu0 %2854
        %2858 = vrot.lane.b32.xlu0 %v801, 8
        %v2859 = vpop.permute.xlu0 %2858
        %2862 = vrot.lane.b32.xlu0 %v802, 10
        %v2863 = vpop.permute.xlu0 %2862
        %2866 = vrot.lane.b32.xlu0 %v803, 12
        %v2867 = vpop.permute.xlu0 %2866
        %2870 = vrot.lane.b32.xlu0 %v804, 14
        %v2871 = vpop.permute.xlu0 %2870
        %2874 = vrot.lane.b32.xlu0 %v933, 16
        %v2875 = vpop.permute.xlu0 %2874
        %2878 = vrot.lane.b32.xlu0 %v934, 18
        %v2879 = vpop.permute.xlu0 %2878
        %2882 = vrot.lane.b32.xlu0 %v935, 20
        %v2883 = vpop.permute.xlu0 %2882
        %2886 = vrot.lane.b32.xlu0 %v936, 22
        %v2887 = vpop.permute.xlu0 %2886
        %2890 = vrot.lane.b32.xlu0 %v937, 24
        %v2891 = vpop.permute.xlu0 %2890
        %2894 = vrot.lane.b32.xlu0 %v938, 26
        %v2895 = vpop.permute.xlu0 %2894
        %2898 = vrot.lane.b32.xlu0 %v939, 28
        %v2899 = vpop.permute.xlu0 %2898
        %2902 = vrot.lane.b32.xlu0 %v940, 30
        %v2903 = vpop.permute.xlu0 %2902
        %2906 = vrot.lane.b32.xlu0 %v1069, 32
        %v2907 = vpop.permute.xlu0 %2906
        %2910 = vrot.lane.b32.xlu0 %v1070, 34
        %v2911 = vpop.permute.xlu0 %2910
        %2914 = vrot.lane.b32.xlu0 %v1071, 36
        %v2915 = vpop.permute.xlu0 %2914
        %2918 = vrot.lane.b32.xlu0 %v1072, 38
        %v2919 = vpop.permute.xlu0 %2918
        %2922 = vrot.lane.b32.xlu0 %v1073, 40
        %v2923 = vpop.permute.xlu0 %2922
        %2926 = vrot.lane.b32.xlu0 %v1074, 42
        %v2927 = vpop.permute.xlu0 %2926
        %2930 = vrot.lane.b32.xlu0 %v1075, 44
        %v2931 = vpop.permute.xlu0 %2930
        %2934 = vrot.lane.b32.xlu0 %v1076, 46
        %v2935 = vpop.permute.xlu0 %2934
        %2938 = vrot.lane.b32.xlu0 %v1205, 48
        %v2939 = vpop.permute.xlu0 %2938
        %2942 = vrot.lane.b32.xlu0 %v1206, 50
        %v2943 = vpop.permute.xlu0 %2942
        %2946 = vrot.lane.b32.xlu0 %v1207, 52
        %v2947 = vpop.permute.xlu0 %2946
        %2950 = vrot.lane.b32.xlu0 %v1208, 54
        %v2951 = vpop.permute.xlu0 %2950
        %2954 = vrot.lane.b32.xlu0 %v1209, 56
        %v2955 = vpop.permute.xlu0 %2954
        %2958 = vrot.lane.b32.xlu0 %v1210, 58
        %v2959 = vpop.permute.xlu0 %2958
        %2962 = vrot.lane.b32.xlu0 %v1211, 60
        %v2963 = vpop.permute.xlu0 %2962
        %2966 = vrot.lane.b32.xlu0 %v1212, 62
        %v2967 = vpop.permute.xlu0 %2966
        %2970 = vrot.lane.b32.xlu0 %v1341, 64
        %v2971 = vpop.permute.xlu0 %2970
        %2974 = vrot.lane.b32.xlu0 %v1342, 66
        %v2975 = vpop.permute.xlu0 %2974
        %2978 = vrot.lane.b32.xlu0 %v1343, 68
        %v2979 = vpop.permute.xlu0 %2978
        %2982 = vrot.lane.b32.xlu0 %v1344, 70
        %v2983 = vpop.permute.xlu0 %2982
        %2986 = vrot.lane.b32.xlu0 %v1345, 72
        %v2987 = vpop.permute.xlu0 %2986
        %2990 = vrot.lane.b32.xlu0 %v1346, 74
        %v2991 = vpop.permute.xlu0 %2990
        %2994 = vrot.lane.b32.xlu0 %v1347, 76
        %v2995 = vpop.permute.xlu0 %2994
        %2998 = vrot.lane.b32.xlu0 %v1348, 78
        %v2999 = vpop.permute.xlu0 %2998
        %3002 = vrot.lane.b32.xlu0 %v1477, 80
        %v3003 = vpop.permute.xlu0 %3002
        %3006 = vrot.lane.b32.xlu0 %v1478, 82
        %v3007 = vpop.permute.xlu0 %3006
        %3010 = vrot.lane.b32.xlu0 %v1479, 84
        %v3011 = vpop.permute.xlu0 %3010
        %3014 = vrot.lane.b32.xlu0 %v1480, 86
        %v3015 = vpop.permute.xlu0 %3014
        %3018 = vrot.lane.b32.xlu0 %v1481, 88
        %v3019 = vpop.permute.xlu0 %3018
        %3022 = vrot.lane.b32.xlu0 %v1482, 90
        %v3023 = vpop.permute.xlu0 %3022
        %3026 = vrot.lane.b32.xlu0 %v1483, 92
        %v3027 = vpop.permute.xlu0 %3026
        %3030 = vrot.lane.b32.xlu0 %v1484, 94
        %v3031 = vpop.permute.xlu0 %3030
        %3034 = vrot.lane.b32.xlu0 %v1613, 96
        %v3035 = vpop.permute.xlu0 %3034
        %3038 = vrot.lane.b32.xlu0 %v1614, 98
        %v3039 = vpop.permute.xlu0 %3038
        %3042 = vrot.lane.b32.xlu0 %v1615, 100
        %v3043 = vpop.permute.xlu0 %3042
        %3046 = vrot.lane.b32.xlu0 %v1616, 102
        %v3047 = vpop.permute.xlu0 %3046
        %3050 = vrot.lane.b32.xlu0 %v1617, 104
        %v3051 = vpop.permute.xlu0 %3050
        %3054 = vrot.lane.b32.xlu0 %v1618, 106
        %v3055 = vpop.permute.xlu0 %3054
        %3058 = vrot.lane.b32.xlu0 %v1619, 108
        %v3059 = vpop.permute.xlu0 %3058
        %3062 = vrot.lane.b32.xlu0 %v1620, 110
        %v3063 = vpop.permute.xlu0 %3062
        %3066 = vrot.lane.b32.xlu0 %v1749, 112
        %v3067 = vpop.permute.xlu0 %3066
        %3070 = vrot.lane.b32.xlu0 %v1750, 114
        %v3071 = vpop.permute.xlu0 %3070
        %3074 = vrot.lane.b32.xlu0 %v1751, 116
        %v3075 = vpop.permute.xlu0 %3074
        %3078 = vrot.lane.b32.xlu0 %v1752, 118
        %v3079 = vpop.permute.xlu0 %3078
        %3082 = vrot.lane.b32.xlu0 %v1753, 120
        %v3083 = vpop.permute.xlu0 %3082
        %3086 = vrot.lane.b32.xlu0 %v1754, 122
        %v3087 = vpop.permute.xlu0 %3086
        %3090 = vrot.lane.b32.xlu0 %v1755, 124
        %v3091 = vpop.permute.xlu0 %3090
        %3094 = vrot.lane.b32.xlu0 %v1756, 126
        %v3095 = vpop.permute.xlu0 %3094
        %3098 = vrot.lane.b32.xlu0 %v1886, 2
        %v3099 = vpop.permute.xlu0 %3098
        %3102 = vrot.lane.b32.xlu0 %v1887, 4
        %v3103 = vpop.permute.xlu0 %3102
        %3106 = vrot.lane.b32.xlu0 %v1888, 6
        %v3107 = vpop.permute.xlu0 %3106
        %3110 = vrot.lane.b32.xlu0 %v1889, 8
        %v3111 = vpop.permute.xlu0 %3110
        %3114 = vrot.lane.b32.xlu0 %v1890, 10
        %v3115 = vpop.permute.xlu0 %3114
        %3118 = vrot.lane.b32.xlu0 %v1891, 12
        %v3119 = vpop.permute.xlu0 %3118
        %3122 = vrot.lane.b32.xlu0 %v1892, 14
        %v3123 = vpop.permute.xlu0 %3122
        %3126 = vrot.lane.b32.xlu0 %v2021, 16
        %v3127 = vpop.permute.xlu0 %3126
        %3130 = vrot.lane.b32.xlu0 %v2022, 18
        %v3131 = vpop.permute.xlu0 %3130
        %3134 = vrot.lane.b32.xlu0 %v2023, 20
        %v3135 = vpop.permute.xlu0 %3134
        %3138 = vrot.lane.b32.xlu0 %v2024, 22
        %v3139 = vpop.permute.xlu0 %3138
        %3142 = vrot.lane.b32.xlu0 %v2025, 24
        %v3143 = vpop.permute.xlu0 %3142
        %3146 = vrot.lane.b32.xlu0 %v2026, 26
        %v3147 = vpop.permute.xlu0 %3146
        %3150 = vrot.lane.b32.xlu0 %v2027, 28
        %v3151 = vpop.permute.xlu0 %3150
        %3154 = vrot.lane.b32.xlu0 %v2028, 30
        %v3155 = vpop.permute.xlu0 %3154
        %3158 = vrot.lane.b32.xlu0 %v2157, 32
        %v3159 = vpop.permute.xlu0 %3158
        %3162 = vrot.lane.b32.xlu0 %v2158, 34
        %v3163 = vpop.permute.xlu0 %3162
        %3166 = vrot.lane.b32.xlu0 %v2159, 36
        %v3167 = vpop.permute.xlu0 %3166
        %3170 = vrot.lane.b32.xlu0 %v2160, 38
        %v3171 = vpop.permute.xlu0 %3170
        %3174 = vrot.lane.b32.xlu0 %v2161, 40
        %v3175 = vpop.permute.xlu0 %3174
        %3178 = vrot.lane.b32.xlu0 %v2162, 42
        %v3179 = vpop.permute.xlu0 %3178
        %3182 = vrot.lane.b32.xlu0 %v2163, 44
        %v3183 = vpop.permute.xlu0 %3182
        %3186 = vrot.lane.b32.xlu0 %v2164, 46
        %v3187 = vpop.permute.xlu0 %3186
        %3190 = vrot.lane.b32.xlu0 %v2293, 48
        %v3191 = vpop.permute.xlu0 %3190
        %3194 = vrot.lane.b32.xlu0 %v2294, 50
        %v3195 = vpop.permute.xlu0 %3194
        %3198 = vrot.lane.b32.xlu0 %v2295, 52
        %v3199 = vpop.permute.xlu0 %3198
        %3202 = vrot.lane.b32.xlu0 %v2296, 54
        %v3203 = vpop.permute.xlu0 %3202
        %3206 = vrot.lane.b32.xlu0 %v2297, 56
        %v3207 = vpop.permute.xlu0 %3206
        %3210 = vrot.lane.b32.xlu0 %v2298, 58
        %v3211 = vpop.permute.xlu0 %3210
        %3214 = vrot.lane.b32.xlu0 %v2299, 60
        %v3215 = vpop.permute.xlu0 %3214
        %3218 = vrot.lane.b32.xlu0 %v2300, 62
        %v3219 = vpop.permute.xlu0 %3218
        %3222 = vrot.lane.b32.xlu0 %v2429, 64
        %v3223 = vpop.permute.xlu0 %3222
        %3226 = vrot.lane.b32.xlu0 %v2430, 66
        %v3227 = vpop.permute.xlu0 %3226
        %3230 = vrot.lane.b32.xlu0 %v2431, 68
        %v3231 = vpop.permute.xlu0 %3230
        %3234 = vrot.lane.b32.xlu0 %v2432, 70
        %v3235 = vpop.permute.xlu0 %3234
        %3238 = vrot.lane.b32.xlu0 %v2433, 72
        %v3239 = vpop.permute.xlu0 %3238
        %3242 = vrot.lane.b32.xlu0 %v2434, 74
        %v3243 = vpop.permute.xlu0 %3242
        %3246 = vrot.lane.b32.xlu0 %v2435, 76
        %v3247 = vpop.permute.xlu0 %3246
        %3250 = vrot.lane.b32.xlu0 %v2436, 78
        %v3251 = vpop.permute.xlu0 %3250
        %3254 = vrot.lane.b32.xlu0 %v2565, 80
        %v3255 = vpop.permute.xlu0 %3254
        %3258 = vrot.lane.b32.xlu0 %v2566, 82
        %v3259 = vpop.permute.xlu0 %3258
        %3262 = vrot.lane.b32.xlu0 %v2567, 84
        %v3263 = vpop.permute.xlu0 %3262
        %3266 = vrot.lane.b32.xlu0 %v2568, 86
        %v3267 = vpop.permute.xlu0 %3266
        %3270 = vrot.lane.b32.xlu0 %v2569, 88
        %v3271 = vpop.permute.xlu0 %3270
        %3274 = vrot.lane.b32.xlu0 %v2570, 90
        %v3275 = vpop.permute.xlu0 %3274
        %3278 = vrot.lane.b32.xlu0 %v2571, 92
        %v3279 = vpop.permute.xlu0 %3278
        %3282 = vrot.lane.b32.xlu0 %v2572, 94
        %v3283 = vpop.permute.xlu0 %3282
        %3286 = vrot.lane.b32.xlu0 %v2701, 96
        %v3287 = vpop.permute.xlu0 %3286
        %3290 = vrot.lane.b32.xlu0 %v2702, 98
        %v3291 = vpop.permute.xlu0 %3290
        %3294 = vrot.lane.b32.xlu0 %v2703, 100
        %v3295 = vpop.permute.xlu0 %3294
        %3298 = vrot.lane.b32.xlu0 %v2704, 102
        %v3299 = vpop.permute.xlu0 %3298
        %3302 = vrot.lane.b32.xlu0 %v2705, 104
        %v3303 = vpop.permute.xlu0 %3302
        %3306 = vrot.lane.b32.xlu0 %v2706, 106
        %v3307 = vpop.permute.xlu0 %3306
        %3310 = vrot.lane.b32.xlu0 %v2707, 108
        %v3311 = vpop.permute.xlu0 %3310
        %3314 = vrot.lane.b32.xlu0 %v2708, 110
        %v3315 = vpop.permute.xlu0 %3314
        %3318 = vrot.lane.b32.xlu0 %v2837, 112
        %v3319 = vpop.permute.xlu0 %3318
        %3322 = vrot.lane.b32.xlu0 %v2838, 114
        %v3323 = vpop.permute.xlu0 %3322
        %3326 = vrot.lane.b32.xlu0 %v2839, 116
        %v3327 = vpop.permute.xlu0 %3326
        %3330 = vrot.lane.b32.xlu0 %v2840, 118
        %v3331 = vpop.permute.xlu0 %3330
        %3334 = vrot.lane.b32.xlu0 %v2841, 120
        %v3335 = vpop.permute.xlu0 %3334
        %3338 = vrot.lane.b32.xlu0 %v2842, 122
        %v3339 = vpop.permute.xlu0 %3338
        %3342 = vrot.lane.b32.xlu0 %v2843, 124
        %v3343 = vpop.permute.xlu0 %3342
        %3346 = vrot.lane.b32.xlu0 %v2844, 126
        %v3347 = vpop.permute.xlu0 %3346
        %vm3349 = vcmask 15360
        %v3350 = vsel %vm3349, %v797, %v2847
        %vm3351 = vcmask 31744
        %v3352 = vsel %vm3351, %v3350, %v2851
        %vm3353 = vcmask 48128
        %v3354 = vsel %vm3353, %v3352, %v2855
        %vm3355 = vcmask 64512
        %v3356 = vsel %vm3355, %v3354, %v2859
        %vm3357 = vcmask 80896
        %v3358 = vsel %vm3357, %v3356, %v2863
        %vm3359 = vcmask 97280
        %v3360 = vsel %vm3359, %v3358, %v2867
        %vm3361 = vcmask 113664
        %v3362 = vsel %vm3361, %v3360, %v2871
        %vm3363 = vcmask 130048
        %v3364 = vsel %vm3363, %v3362, %v2875
        %vm3365 = vcmask 146432
        %v3366 = vsel %vm3365, %v3364, %v2879
        %vm3367 = vcmask 162816
        %v3368 = vsel %vm3367, %v3366, %v2883
        %vm3369 = vcmask 179200
        %v3370 = vsel %vm3369, %v3368, %v2887
        %vm3371 = vcmask 195584
        %v3372 = vsel %vm3371, %v3370, %v2891
        %vm3373 = vcmask 211968
        %v3374 = vsel %vm3373, %v3372, %v2895
        %vm3375 = vcmask 228352
        %v3376 = vsel %vm3375, %v3374, %v2899
        %vm3377 = vcmask 244736
        %v3378 = vsel %vm3377, %v3376, %v2903
        %vm3379 = vcmask 261120
        %v3380 = vsel %vm3379, %v3378, %v2907
        %vm3381 = vcmask 277504
        %v3382 = vsel %vm3381, %v3380, %v2911
        %vm3383 = vcmask 293888
        %v3384 = vsel %vm3383, %v3382, %v2915
        %vm3385 = vcmask 310272
        %v3386 = vsel %vm3385, %v3384, %v2919
        %vm3387 = vcmask 326656
        %v3388 = vsel %vm3387, %v3386, %v2923
        %vm3389 = vcmask 343040
        %v3390 = vsel %vm3389, %v3388, %v2927
        %vm3391 = vcmask 359424
        %v3392 = vsel %vm3391, %v3390, %v2931
        %vm3393 = vcmask 375808
        %v3394 = vsel %vm3393, %v3392, %v2935
        %vm3395 = vcmask 392192
        %v3396 = vsel %vm3395, %v3394, %v2939
        %vm3397 = vcmask 408576
        %v3398 = vsel %vm3397, %v3396, %v2943
        %vm3399 = vcmask 424960
        %v3400 = vsel %vm3399, %v3398, %v2947
        %vm3401 = vcmask 441344
        %v3402 = vsel %vm3401, %v3400, %v2951
        %vm3403 = vcmask 457728
        %v3404 = vsel %vm3403, %v3402, %v2955
        %vm3405 = vcmask 474112
        %v3406 = vsel %vm3405, %v3404, %v2959
        %vm3407 = vcmask 490496
        %v3408 = vsel %vm3407, %v3406, %v2963
        %vm3409 = vcmask 506880
        %v3410 = vsel %vm3409, %v3408, %v2967
        %vm3411 = vcmask 523264
        %v3412 = vsel %vm3411, %v3410, %v2971
        %vm3413 = vcmask 539648
        %v3414 = vsel %vm3413, %v3412, %v2975
        %vm3415 = vcmask 556032
        %v3416 = vsel %vm3415, %v3414, %v2979
        %vm3417 = vcmask 572416
        %v3418 = vsel %vm3417, %v3416, %v2983
        %vm3419 = vcmask 588800
        %v3420 = vsel %vm3419, %v3418, %v2987
        %vm3421 = vcmask 605184
        %v3422 = vsel %vm3421, %v3420, %v2991
        %vm3423 = vcmask 621568
        %v3424 = vsel %vm3423, %v3422, %v2995
        %vm3425 = vcmask 637952
        %v3426 = vsel %vm3425, %v3424, %v2999
        %vm3427 = vcmask 654336
        %v3428 = vsel %vm3427, %v3426, %v3003
        %vm3429 = vcmask 670720
        %v3430 = vsel %vm3429, %v3428, %v3007
        %vm3431 = vcmask 687104
        %v3432 = vsel %vm3431, %v3430, %v3011
        %vm3433 = vcmask 703488
        %v3434 = vsel %vm3433, %v3432, %v3015
        %vm3435 = vcmask 719872
        %v3436 = vsel %vm3435, %v3434, %v3019
        %vm3437 = vcmask 736256
        %v3438 = vsel %vm3437, %v3436, %v3023
        %vm3439 = vcmask 752640
        %v3440 = vsel %vm3439, %v3438, %v3027
        %vm3441 = vcmask 769024
        %v3442 = vsel %vm3441, %v3440, %v3031
        %vm3443 = vcmask 785408
        %v3444 = vsel %vm3443, %v3442, %v3035
        %vm3445 = vcmask 801792
        %v3446 = vsel %vm3445, %v3444, %v3039
        %vm3447 = vcmask 818176
        %v3448 = vsel %vm3447, %v3446, %v3043
        %vm3449 = vcmask 834560
        %v3450 = vsel %vm3449, %v3448, %v3047
        %vm3451 = vcmask 850944
        %v3452 = vsel %vm3451, %v3450, %v3051
        %vm3453 = vcmask 867328
        %v3454 = vsel %vm3453, %v3452, %v3055
        %vm3455 = vcmask 883712
        %v3456 = vsel %vm3455, %v3454, %v3059
        %vm3457 = vcmask 900096
        %v3458 = vsel %vm3457, %v3456, %v3063
        %vm3459 = vcmask 916480
        %v3460 = vsel %vm3459, %v3458, %v3067
        %vm3461 = vcmask 932864
        %v3462 = vsel %vm3461, %v3460, %v3071
        %vm3463 = vcmask 949248
        %v3464 = vsel %vm3463, %v3462, %v3075
        %vm3465 = vcmask 965632
        %v3466 = vsel %vm3465, %v3464, %v3079
        %vm3467 = vcmask 982016
        %v3468 = vsel %vm3467, %v3466, %v3083
        %vm3469 = vcmask 998400
        %v3470 = vsel %vm3469, %v3468, %v3087
        %vm3471 = vcmask 1014784
        %v3472 = vsel %vm3471, %v3470, %v3091
        %vm3473 = vcmask 1031168
        %v3474 = vsel %vm3473, %v3472, %v3095
        %v3475 = vsel %vm3349, %v1885, %v3099
        %v3476 = vsel %vm3351, %v3475, %v3103
        %v3477 = vsel %vm3353, %v3476, %v3107
        %v3478 = vsel %vm3355, %v3477, %v3111
        %v3479 = vsel %vm3357, %v3478, %v3115
        %v3480 = vsel %vm3359, %v3479, %v3119
        %v3481 = vsel %vm3361, %v3480, %v3123
        %v3482 = vsel %vm3363, %v3481, %v3127
        %v3483 = vsel %vm3365, %v3482, %v3131
        %v3484 = vsel %vm3367, %v3483, %v3135
        %v3485 = vsel %vm3369, %v3484, %v3139
        %v3486 = vsel %vm3371, %v3485, %v3143
        %v3487 = vsel %vm3373, %v3486, %v3147
        %v3488 = vsel %vm3375, %v3487, %v3151
        %v3489 = vsel %vm3377, %v3488, %v3155
        %v3490 = vsel %vm3379, %v3489, %v3159
        %v3491 = vsel %vm3381, %v3490, %v3163
        %v3492 = vsel %vm3383, %v3491, %v3167
        %v3493 = vsel %vm3385, %v3492, %v3171
        %v3494 = vsel %vm3387, %v3493, %v3175
        %v3495 = vsel %vm3389, %v3494, %v3179
        %v3496 = vsel %vm3391, %v3495, %v3183
        %v3497 = vsel %vm3393, %v3496, %v3187
        %v3498 = vsel %vm3395, %v3497, %v3191
        %v3499 = vsel %vm3397, %v3498, %v3195
        %v3500 = vsel %vm3399, %v3499, %v3199
        %v3501 = vsel %vm3401, %v3500, %v3203
        %v3502 = vsel %vm3403, %v3501, %v3207
        %v3503 = vsel %vm3405, %v3502, %v3211
        %v3504 = vsel %vm3407, %v3503, %v3215
        %v3505 = vsel %vm3409, %v3504, %v3219
        %v3506 = vsel %vm3411, %v3505, %v3223
        %v3507 = vsel %vm3413, %v3506, %v3227
        %v3508 = vsel %vm3415, %v3507, %v3231
        %v3509 = vsel %vm3417, %v3508, %v3235
        %v3510 = vsel %vm3419, %v3509, %v3239
        %v3511 = vsel %vm3421, %v3510, %v3243
        %v3512 = vsel %vm3423, %v3511, %v3247
        %v3513 = vsel %vm3425, %v3512, %v3251
        %v3514 = vsel %vm3427, %v3513, %v3255
        %v3515 = vsel %vm3429, %v3514, %v3259
        %v3516 = vsel %vm3431, %v3515, %v3263
        %v3517 = vsel %vm3433, %v3516, %v3267
        %v3518 = vsel %vm3435, %v3517, %v3271
        %v3519 = vsel %vm3437, %v3518, %v3275
        %v3520 = vsel %vm3439, %v3519, %v3279
        %v3521 = vsel %vm3441, %v3520, %v3283
        %v3522 = vsel %vm3443, %v3521, %v3287
        %v3523 = vsel %vm3445, %v3522, %v3291
        %v3524 = vsel %vm3447, %v3523, %v3295
        %v3525 = vsel %vm3449, %v3524, %v3299
        %v3526 = vsel %vm3451, %v3525, %v3303
        %v3527 = vsel %vm3453, %v3526, %v3307
        %v3528 = vsel %vm3455, %v3527, %v3311
        %v3529 = vsel %vm3457, %v3528, %v3315
        %v3530 = vsel %vm3459, %v3529, %v3319
        %v3531 = vsel %vm3461, %v3530, %v3323
        %v3532 = vsel %vm3463, %v3531, %v3327
        %v3533 = vsel %vm3465, %v3532, %v3331
        %v3534 = vsel %vm3467, %v3533, %v3335
        %v3535 = vsel %vm3469, %v3534, %v3339
        %v3536 = vsel %vm3471, %v3535, %v3343
        %v3537 = vsel %vm3473, %v3536, %v3347
        %3539 = vrot.lane.b32.xlu0 %v3474, 32
        %v3540 = vpop.permute.xlu0 %3539
        %3542 = vrot.lane.b32.xlu0 %v3474, 64
        %v3543 = vpop.permute.xlu0 %3542
        %3545 = vrot.lane.b32.xlu0 %v3474, 96
        %v3546 = vpop.permute.xlu0 %3545
        %3549 = vrot.lane.b32.xlu0 %v3537, 32
        %v3550 = vpop.permute.xlu0 %3549
        %3552 = vrot.lane.b32.xlu0 %v3537, 64
        %v3553 = vpop.permute.xlu0 %3552
        %3555 = vrot.lane.b32.xlu0 %v3537, 96
        %v3556 = vpop.permute.xlu0 %3555
        %v3558 = vsel %vm3379, %v3474, %v3540
        %v3559 = vsel %vm3411, %v3558, %v3540
        %v3560 = vsel %vm3443, %v3559, %v3543
        %v3561 = vsel %vm3379, %v3543, %v3546
        %v3562 = vsel %vm3411, %v3561, %v3546
        %v3563 = vsel %vm3443, %v3562, %v3474
        %v3564 = vsel %vm3379, %v3537, %v3550
        %v3565 = vsel %vm3411, %v3564, %v3550
        %v3566 = vsel %vm3443, %v3565, %v3553
        %v3567 = vsel %vm3379, %v3553, %v3556
        %v3568 = vsel %vm3411, %v3567, %v3556
        %v3569 = vsel %vm3443, %v3568, %v3537
        %3570 = vst [vmem:[%s131] sm:$0xff] %v3560
        %3571 = vst [vmem:[%s131 + $0x8] sm:$0xff] %v3563
        %3572 = vst [vmem:[%s131 + $0x10] sm:$0xff] %v3566
        %3573 = vst [vmem:[%s131 + $0x18] sm:$0xff] %v3569
        %s3574 = sand.u32 %s52, 1
        %s3575 = scalar_lea.sflag [#allocation4], %s3574
        %s3576 = sand.u32 %s52, 1
        %s3577 = smul.addr %s3576, 32
        %s3578 = scalar_lea.vmem [#allocation5], %s3577
        // Predicated region
        $region29: #{tpu_custom_call.1} parent=23 // pred_check
          %p3579 = pneg %p62
        $region30: #{tpu_custom_call.1} parent=23 // pred_check_branch
          %3581 = sbr.rel (%p3579) target = $region32
        $region31: #{tpu_custom_call.1} parent=23 // pred_region
          %s3583 = ssub.s32 512, 512
          %3584 = vsyncadd %s3575, %s3583
          %s3585 = smul.addr %s18, 4
          %s3586 = smul.addr %s3585, 128
          %s3587 = scalar_lea.hbm %s1, %s3586
          %s3589 = sshll.u32 %s3578, 4
          %s3590 = int_to_ptr.vmem [resolvable:$true] %s3589
          %3592 = dma.vmem_to_hbm [thread:$0]  %s3590, 512, %s3587, %s3575
        $region32: #{tpu_custom_call.1} parent=23 // pred_fallthru
          _
      $region24: #{tpu_custom_call.1} parent=5 // pred_fallthru
        _
      %p3593 = scmp.le.s32.totalorder 2, %s13
      // Predicated region
      $region33: #{tpu_custom_call.1} parent=5 // pred_check
        %p3594 = pneg %p3593
      $region34: #{tpu_custom_call.1} parent=5 // pred_check_branch
        %3596 = sbr.rel (%p3594) target = $region36
      $region35: #{tpu_custom_call.1} parent=5 // pred_region
        %s3597 = ssub.s32 %s13, 2
        // Predicated region
        $region37: #{tpu_custom_call.1} parent=35 // pred_check
          %p3598 = pneg %p68
        $region38: #{tpu_custom_call.1} parent=35 // pred_check_branch
          %3600 = sbr.rel (%p3598) target = $region40
        $region39: #{tpu_custom_call.1} parent=35 // pred_region
          %s3601 = sand.u32 %s53, 1
          %s3602 = scalar_lea.sflag [#allocation4], %s3601
          %s3603 = sand.u32 %s53, 1
          %s3604 = smul.addr %s3603, 32
          %s3605 = scalar_lea.vmem [#allocation5], %s3604
          %3606 = dma.done %s3602, 512
        $region40: #{tpu_custom_call.1} parent=35 // pred_fallthru
          _
      $region36: #{tpu_custom_call.1} parent=5 // pred_fallthru
        _
    $region6: #{tpu_custom_call.1} parent=1 // loop_footer
      %s17 = sadd.s32 1, %s13
    $region7: #{tpu_custom_call.1} parent=1 // loop_footer_branch
      %12 = sbr.rel target = $region3
    $region8: #{tpu_custom_call.1} parent=1 // loop_exit
      _
    %3607 = vsyncpa [#allocation3], 1
    %s3608 = scalar_lea.sflag [#allocation3], 1
    %3609 = vsyncpa %s3608, 1
    %3610 = vsyncpa [#allocation4], 1
    %s3611 = scalar_lea.sflag [#allocation4], 1
    %3612 = vsyncpa %s3611, 1

</llo_original>
